<compile_context>
chip_gen: v5e
topology: v5e:2x2
jax: 0.10.0
libtpu: 0.0.40
codegen_flags: <defaults>
</compile_context>

<pallas_src>
import functools
import math

import jax
import jax.numpy as jnp
from jax.experimental import pallas as pl
from jax.experimental.pallas import tpu as pltpu

MAX_ROW_BLOCK = 512            # rows handled as one full block (no padding)
ROW_TILE = 256                 # row tile when tiling is required
VMEM_LIMIT = 48 * 1024 * 1024  # <= 64 MiB/TC on v7x


def _round_up(v, m):
    return (v + m - 1) // m * m


# ----------------------------------------------------------------------------
# Kernel 1: fused q/k/v projection.
#   q = (x1 @ wq + bq) * scale        (softmax scale folded in here)
#   k =  x2 @ wk + bk
#   v =  x2 @ wv + bv
# x1/x2 arrive as f32 and are cast to bf16 in VMEM.  Single K step (the whole
# model dim C is one block), so no accumulator scratch / init / finalize.
# ----------------------------------------------------------------------------
def _qkv_proj_kernel(x1_ref, x2_ref, wq_ref, wk_ref, wv_ref,
                     bq_ref, bk_ref, bv_ref, q_ref, k_ref, v_ref, *, scale):
    x1 = x1_ref[...].astype(jnp.bfloat16)
    x2 = x2_ref[...].astype(jnp.bfloat16)

    q = jnp.dot(x1, wq_ref[...], preferred_element_type=jnp.float32) + bq_ref[...]
    q_ref[...] = (q * scale).astype(q_ref.dtype)

    k = jnp.dot(x2, wk_ref[...], preferred_element_type=jnp.float32) + bk_ref[...]
    k_ref[...] = k.astype(k_ref.dtype)

    v = jnp.dot(x2, wv_ref[...], preferred_element_type=jnp.float32) + bv_ref[...]
    v_ref[...] = v.astype(v_ref.dtype)


@functools.lru_cache(maxsize=None)
def _build_qkv_proj_call(Mp, C, tm, scale, out_dtype):
    # TODO(synk): for very large model dims (C >~ 2048) the (C, C) weight block
    # should be tiled over the contraction dim as well.
    grid = (Mp // tm,)
    kernel = functools.partial(_qkv_proj_kernel, scale=scale)
    row_spec = pl.BlockSpec((tm, C), lambda i: (i, 0))
    w_spec = pl.BlockSpec((C, C), lambda i: (0, 0))
    b_spec = pl.BlockSpec((1, C), lambda i: (0, 0))
    return pl.pallas_call(
        kernel,
        out_shape=(jax.ShapeDtypeStruct((Mp, C), out_dtype),) * 3,
        grid_spec=pltpu.PrefetchScalarGridSpec(
            num_scalar_prefetch=0,
            grid=grid,
            in_specs=[row_spec, row_spec, w_spec, w_spec, w_spec,
                      b_spec, b_spec, b_spec],
            out_specs=[row_spec, row_spec, row_spec],
        ),
        compiler_params=pltpu.CompilerParams(
            dimension_semantics=("parallel",),
            vmem_limit_bytes=VMEM_LIMIT,
        ),
    )


# ----------------------------------------------------------------------------
# Kernel 2: multi-head attention + fused output projection.
# Blocks keep the full channel dim (lane-dense); heads are handled by static
# slicing inside the kernel, so no head-major transposes are ever needed.
# KV is kept whole per batch (exact softmax); the proj matmul runs in the
# epilogue so the attention output never touches HBM.
# ----------------------------------------------------------------------------
def _attn_proj_kernel(q_ref, k_ref, v_ref, wp_ref, bp_ref, o_ref,
                      *, num_heads, head_dim):
    q = q_ref[...]             # (tq, C) bf16, softmax scale already applied
    k = k_ref[...]             # (Nkv, C) bf16
    v = v_ref[...]             # (Nkv, C) bf16
    wp = wp_ref[...]           # (C, C)  bf16

    out = None
    for h in range(num_heads):
        lo = h * head_dim
        hi = lo + head_dim
        # scores: (tq, D) x (Nkv, D) -> (tq, Nkv), f32 accumulate on the MXU
        s = jax.lax.dot_general(q[:, lo:hi], k[:, lo:hi],
                                (((1,), (1,)), ((), ())),
                                preferred_element_type=jnp.float32)
        s = s - jnp.max(s, axis=-1, keepdims=True)
        p = jnp.exp(s)
        p = p * pl.reciprocal(jnp.sum(p, axis=-1, keepdims=True), approx=True)
        # per-head attention output (tq, D), then fold straight into the
        # output projection (accumulate over heads -> no lane concat needed)
        oh = jnp.dot(p.astype(v.dtype), v[:, lo:hi],
                     preferred_element_type=jnp.float32)
        ph = jnp.dot(oh.astype(wp.dtype), wp[lo:hi, :],
                     preferred_element_type=jnp.float32)
        out = ph if out is None else out + ph

    # attn_drop / proj_drop: identity (p = 0.0, eval mode)
    o_ref[...] = (out + bp_ref[...]).astype(o_ref.dtype)


@functools.lru_cache(maxsize=None)
def _build_attn_proj_call(B, Nq, Nkv, C, tq, num_heads, out_dtype):
    # TODO(synk): for very long sequences (KV block too large for VMEM) a
    # kv-tiled flash-style variant with per-head online-softmax stats is needed.
    grid = (B, Nq // tq)
    kernel = functools.partial(_attn_proj_kernel, num_heads=num_heads,
                               head_dim=C // num_heads)
    return pl.pallas_call(
        kernel,
        out_shape=jax.ShapeDtypeStruct((B, Nq, C), out_dtype),
        grid_spec=pltpu.PrefetchScalarGridSpec(
            num_scalar_prefetch=0,
            grid=grid,
            in_specs=[
                pl.BlockSpec((pl.Squeezed(), tq, C), lambda b, qi: (b, qi, 0)),
                pl.BlockSpec((pl.Squeezed(), Nkv, C), lambda b, qi: (b, 0, 0)),
                pl.BlockSpec((pl.Squeezed(), Nkv, C), lambda b, qi: (b, 0, 0)),
                pl.BlockSpec((C, C), lambda b, qi: (0, 0)),
                pl.BlockSpec((1, C), lambda b, qi: (0, 0)),
            ],
            out_specs=pl.BlockSpec((pl.Squeezed(), tq, C),
                                   lambda b, qi: (b, qi, 0)),
        ),
        compiler_params=pltpu.CompilerParams(
            dimension_semantics=("parallel", "parallel"),
            vmem_limit_bytes=VMEM_LIMIT,
        ),
    )


# ----------------------------------------------------------------------------
# Parameters & forward pass
# ----------------------------------------------------------------------------
def make_cross_attention_params(key, dim, num_heads=8, qkv_bias=False):
    kq, kk, kv, kp, kb = jax.random.split(key, 5)
    bound = 1.0 / math.sqrt(dim)

    def lin_w(k):
        return jax.random.uniform(k, (dim, dim), jnp.float32, -bound, bound)

    wq, wk, wv, wp = lin_w(kq), lin_w(kk), lin_w(kv), lin_w(kp)
    if qkv_bias:
        kb1, kb2, kb3, kb = jax.random.split(kb, 4)
        bq = jax.random.uniform(kb1, (dim,), jnp.float32, -bound, bound)
        bk = jax.random.uniform(kb2, (dim,), jnp.float32, -bound, bound)
        bv = jax.random.uniform(kb3, (dim,), jnp.float32, -bound, bound)
    else:
        bq = bk = bv = jnp.zeros((dim,), jnp.float32)
    bp = jax.random.uniform(kb, (dim,), jnp.float32, -bound, bound)
    # Weights pre-cast to bf16 once; biases stored as (1, dim) f32 for the
    # kernels' lane-dense epilogue adds.
    return {
        "wq": wq.astype(jnp.bfloat16), "bq": bq.reshape(1, dim),
        "wk": wk.astype(jnp.bfloat16), "bk": bk.reshape(1, dim),
        "wv": wv.astype(jnp.bfloat16), "bv": bv.reshape(1, dim),
        "wp": wp.astype(jnp.bfloat16), "bp": bp.reshape(1, dim),
    }


def cross_attention_forward(params, x1, x2, num_heads):
    B, N, C = x1.shape
    assert C % num_heads == 0
    D = C // num_heads
    scale = D ** -0.5
    M = B * N

    # ---- fused q/k/v projection (x1, x2 read once; scale folded into q) ----
    x1f = x1.reshape(M, C)          # leading-dim reshape: metadata only
    x2f = x2.reshape(M, C)
    if M <= MAX_ROW_BLOCK:
        Mp, tm = M, M               # full-row block: no padding, no slicing
    else:
        Mp, tm = _round_up(M, ROW_TILE), ROW_TILE
        # TODO(synk): in-kernel row masking would avoid this pad/slice HBM pass.
        x1f = jnp.pad(x1f, ((0, Mp - M), (0, 0)))
        x2f = jnp.pad(x2f, ((0, Mp - M), (0, 0)))
    q, k, v = _build_qkv_proj_call(Mp, C, tm, float(scale), jnp.bfloat16)(
        x1f, x2f,
        params["wq"], params["wk"], params["wv"],
        params["bq"], params["bk"], params["bv"])
    if Mp != M:
        q, k, v = q[:M], k[:M], v[:M]
    q = q.reshape(B, N, C)
    k = k.reshape(B, N, C)
    v = v.reshape(B, N, C)

    # ---- attention (all heads per lane-dense block) + fused proj -----------
    if N <= MAX_ROW_BLOCK:
        Nqp, tq = N, N
    else:
        Nqp, tq = _round_up(N, ROW_TILE), ROW_TILE
        # TODO(synk): a cdiv grid with masked stores would avoid this q pad.
        q = jnp.pad(q, ((0, 0), (0, Nqp - N), (0, 0)))
    out = _build_attn_proj_call(B, Nqp, N, C, tq, num_heads, jnp.float32)(
        q, k, v, params["wp"], params["bp"])
    if Nqp != N:
        out = out[:, :N, :]
    return out


def cross_attention_ref(params, x1, x2, num_heads):
    """Pure-JAX f32 reference matching the PyTorch forward."""
    B, N, C = x1.shape
    D = C // num_heads
    scale = D ** -0.5
    wq = params["wq"].astype(jnp.float32)
    wk = params["wk"].astype(jnp.float32)
    wv = params["wv"].astype(jnp.float32)
    wp = params["wp"].astype(jnp.float32)
    q = x1 @ wq + params["bq"]
    k = x2 @ wk + params["bk"]
    v = x2 @ wv + params["bv"]

    def heads(t):
        return t.reshape(B, N, num_heads, D).transpose(0, 2, 1, 3)

    qh, kh, vh = heads(q), heads(k), heads(v)
    attn = jax.nn.softmax(
        jnp.einsum("bhqd,bhkd->bhqk", qh, kh) * scale, axis=-1)
    o = jnp.einsum("bhqk,bhkd->bhqd", attn, vh)
    o = o.transpose(0, 2, 1, 3).reshape(B, N, C)
    return o @ wp + params["bp"]


# ----------------------------------------------------------------------------
if __name__ == "__main__":
    dim, num_heads = 128, 8          # head_dim = 16
    B, N = 2, 16
    key = jax.random.PRNGKey(0)
    kparams, k1, k2 = jax.random.split(key, 3)
    params = make_cross_attention_params(kparams, dim, num_heads)
    x1 = jax.random.normal(k1, (B, N, dim), jnp.float32)
    x2 = jax.random.normal(k2, (B, N, dim), jnp.float32)

    fwd = jax.jit(functools.partial(cross_attention_forward, num_heads=num_heads))
    out = jax.block_until_ready(fwd(params, x1, x2))

    assert out.shape == (B, N, dim), out.shape
    assert bool(jnp.all(jnp.isfinite(out)))

    ref = cross_attention_ref(params, x1, x2, num_heads)
    max_err = float(jnp.max(jnp.abs(out - ref)))
    assert max_err < 0.1, f"max abs error vs reference too large: {max_err}"

    print("KERNEL_OK")
</pallas_src>

<mosaic_0001>
module attributes {stable_mosaic.version = 11 : i64} {
  func.func @_qkv_proj_kernel(%arg0: i32, %arg1: memref<32x128xf32, #tpu.memory_space<vmem>>, %arg2: memref<32x128xf32, #tpu.memory_space<vmem>>, %arg3: memref<128x128xbf16, #tpu.memory_space<vmem>>, %arg4: memref<128x128xbf16, #tpu.memory_space<vmem>>, %arg5: memref<128x128xbf16, #tpu.memory_space<vmem>>, %arg6: memref<1x128xf32, #tpu.memory_space<vmem>>, %arg7: memref<1x128xf32, #tpu.memory_space<vmem>>, %arg8: memref<1x128xf32, #tpu.memory_space<vmem>>, %arg9: memref<32x128xbf16, #tpu.memory_space<vmem>>, %arg10: memref<32x128xbf16, #tpu.memory_space<vmem>>, %arg11: memref<32x128xbf16, #tpu.memory_space<vmem>>) attributes {dimension_semantics = [#tpu.dimension_semantics<parallel>], iteration_bounds = array<i64: 1>, scalar_prefetch = 0 : i64, scratch_operands = 0 : i64, tpu.core_type = #tpu.core_type<tc>, window_params = [{transform_indices = @transform_0, window_bounds = array<i64: 32, 128>}, {transform_indices = @transform_1, window_bounds = array<i64: 32, 128>}, {pipeline_mode = #tpu.pipeline_mode<synchronous>, transform_indices = @transform_2, window_bounds = array<i64: 128, 128>}, {pipeline_mode = #tpu.pipeline_mode<synchronous>, transform_indices = @transform_3, window_bounds = array<i64: 128, 128>}, {pipeline_mode = #tpu.pipeline_mode<synchronous>, transform_indices = @transform_4, window_bounds = array<i64: 128, 128>}, {pipeline_mode = #tpu.pipeline_mode<synchronous>, transform_indices = @transform_5, window_bounds = array<i64: 1, 128>}, {pipeline_mode = #tpu.pipeline_mode<synchronous>, transform_indices = @transform_6, window_bounds = array<i64: 1, 128>}, {pipeline_mode = #tpu.pipeline_mode<synchronous>, transform_indices = @transform_7, window_bounds = array<i64: 1, 128>}, {transform_indices = @transform_8, window_bounds = array<i64: 32, 128>}, {transform_indices = @transform_9, window_bounds = array<i64: 32, 128>}, {transform_indices = @transform_10, window_bounds = array<i64: 32, 128>}]} {
    %c0 = arith.constant 0 : index
    %c0_0 = arith.constant 0 : index
    %0 = vector.load %arg1[%c0, %c0_0] : memref<32x128xf32, #tpu.memory_space<vmem>>, vector<32x128xf32>
    %1 = arith.truncf %0 : vector<32x128xf32> to vector<32x128xbf16>
    %c0_1 = arith.constant 0 : index
    %c0_2 = arith.constant 0 : index
    %2 = vector.load %arg2[%c0_1, %c0_2] : memref<32x128xf32, #tpu.memory_space<vmem>>, vector<32x128xf32>
    %3 = arith.truncf %2 : vector<32x128xf32> to vector<32x128xbf16>
    %c0_3 = arith.constant 0 : index
    %c0_4 = arith.constant 0 : index
    %4 = vector.load %arg3[%c0_3, %c0_4] : memref<128x128xbf16, #tpu.memory_space<vmem>>, vector<128x128xbf16>
    %cst = arith.constant dense<0.000000e+00> : vector<32x128xf32>
    %5 = tpu.matmul %1, %4, %cst {dimension_numbers = #tpu.dot_dimension_numbers<[1], [0], [0], [1], [0, 0, 1, 1], [], []>} : vector<32x128xbf16>, vector<128x128xbf16>, vector<32x128xf32> -> vector<32x128xf32>
    %c0_5 = arith.constant 0 : index
    %c0_6 = arith.constant 0 : index
    %6 = vector.load %arg6[%c0_5, %c0_6] : memref<1x128xf32, #tpu.memory_space<vmem>>, vector<1x128xf32>
    %7 = vector.broadcast %6 : vector<1x128xf32> to vector<32x128xf32>
    %8 = arith.addf %5, %7 : vector<32x128xf32>
    %cst_7 = arith.constant 2.500000e-01 : f32
    %9 = vector.broadcast %cst_7 : f32 to vector<32x128xf32>
    %10 = arith.mulf %8, %9 : vector<32x128xf32>
    %11 = arith.truncf %10 : vector<32x128xf32> to vector<32x128xbf16>
    %c0_8 = arith.constant 0 : index
    %c0_9 = arith.constant 0 : index
    %12 = vector.load %arg9[%c0_8, %c0_9] : memref<32x128xbf16, #tpu.memory_space<vmem>>, vector<32x128xbf16>
    tpu.vector_store %arg9[%c0_8, %c0_9], %11 {strides = array<i32>} : memref<32x128xbf16, #tpu.memory_space<vmem>>, vector<32x128xbf16>,
    %c0_10 = arith.constant 0 : index
    %c0_11 = arith.constant 0 : index
    %13 = vector.load %arg4[%c0_10, %c0_11] : memref<128x128xbf16, #tpu.memory_space<vmem>>, vector<128x128xbf16>
    %cst_12 = arith.constant dense<0.000000e+00> : vector<32x128xf32>
    %14 = tpu.matmul %3, %13, %cst_12 {dimension_numbers = #tpu.dot_dimension_numbers<[1], [0], [0], [1], [0, 0, 1, 1], [], []>} : vector<32x128xbf16>, vector<128x128xbf16>, vector<32x128xf32> -> vector<32x128xf32>
    %c0_13 = arith.constant 0 : index
    %c0_14 = arith.constant 0 : index
    %15 = vector.load %arg7[%c0_13, %c0_14] : memref<1x128xf32, #tpu.memory_space<vmem>>, vector<1x128xf32>
    %16 = vector.broadcast %15 : vector<1x128xf32> to vector<32x128xf32>
    %17 = arith.addf %14, %16 : vector<32x128xf32>
    %18 = arith.truncf %17 : vector<32x128xf32> to vector<32x128xbf16>
    %c0_15 = arith.constant 0 : index
    %c0_16 = arith.constant 0 : index
    %19 = vector.load %arg10[%c0_15, %c0_16] : memref<32x128xbf16, #tpu.memory_space<vmem>>, vector<32x128xbf16>
    tpu.vector_store %arg10[%c0_15, %c0_16], %18 {strides = array<i32>} : memref<32x128xbf16, #tpu.memory_space<vmem>>, vector<32x128xbf16>,
    %c0_17 = arith.constant 0 : index
    %c0_18 = arith.constant 0 : index
    %20 = vector.load %arg5[%c0_17, %c0_18] : memref<128x128xbf16, #tpu.memory_space<vmem>>, vector<128x128xbf16>
    %cst_19 = arith.constant dense<0.000000e+00> : vector<32x128xf32>
    %21 = tpu.matmul %3, %20, %cst_19 {dimension_numbers = #tpu.dot_dimension_numbers<[1], [0], [0], [1], [0, 0, 1, 1], [], []>} : vector<32x128xbf16>, vector<128x128xbf16>, vector<32x128xf32> -> vector<32x128xf32>
    %c0_20 = arith.constant 0 : index
    %c0_21 = arith.constant 0 : index
    %22 = vector.load %arg8[%c0_20, %c0_21] : memref<1x128xf32, #tpu.memory_space<vmem>>, vector<1x128xf32>
    %23 = vector.broadcast %22 : vector<1x128xf32> to vector<32x128xf32>
    %24 = arith.addf %21, %23 : vector<32x128xf32>
    %25 = arith.truncf %24 : vector<32x128xf32> to vector<32x128xbf16>
    %c0_22 = arith.constant 0 : index
    %c0_23 = arith.constant 0 : index
    %26 = vector.load %arg11[%c0_22, %c0_23] : memref<32x128xbf16, #tpu.memory_space<vmem>>, vector<32x128xbf16>
    tpu.vector_store %arg11[%c0_22, %c0_23], %25 {strides = array<i32>} : memref<32x128xbf16, #tpu.memory_space<vmem>>, vector<32x128xbf16>,
    return
  }
  func.func @transform_0(%arg0: i32) -> (i32, i32) {
    %c0_i32 = arith.constant 0 : i32
    %c0_i32_0 = arith.constant 0 : i32
    return %arg0, %c0_i32 : i32, i32
  }
  func.func @transform_1(%arg0: i32) -> (i32, i32) {
    %c0_i32 = arith.constant 0 : i32
    %c0_i32_0 = arith.constant 0 : i32
    return %arg0, %c0_i32 : i32, i32
  }
  func.func @transform_2(%arg0: i32) -> (i32, i32) {
    %c0_i32 = arith.constant 0 : i32
    %c0_i32_0 = arith.constant 0 : i32
    %c0_i32_1 = arith.constant 0 : i32
    return %c0_i32, %c0_i32_0 : i32, i32
  }
  func.func @transform_3(%arg0: i32) -> (i32, i32) {
    %c0_i32 = arith.constant 0 : i32
    %c0_i32_0 = arith.constant 0 : i32
    %c0_i32_1 = arith.constant 0 : i32
    return %c0_i32, %c0_i32_0 : i32, i32
  }
  func.func @transform_4(%arg0: i32) -> (i32, i32) {
    %c0_i32 = arith.constant 0 : i32
    %c0_i32_0 = arith.constant 0 : i32
    %c0_i32_1 = arith.constant 0 : i32
    return %c0_i32, %c0_i32_0 : i32, i32
  }
  func.func @transform_5(%arg0: i32) -> (i32, i32) {
    %c0_i32 = arith.constant 0 : i32
    %c0_i32_0 = arith.constant 0 : i32
    %c0_i32_1 = arith.constant 0 : i32
    return %c0_i32, %c0_i32_0 : i32, i32
  }
  func.func @transform_6(%arg0: i32) -> (i32, i32) {
    %c0_i32 = arith.constant 0 : i32
    %c0_i32_0 = arith.constant 0 : i32
    %c0_i32_1 = arith.constant 0 : i32
    return %c0_i32, %c0_i32_0 : i32, i32
  }
  func.func @transform_7(%arg0: i32) -> (i32, i32) {
    %c0_i32 = arith.constant 0 : i32
    %c0_i32_0 = arith.constant 0 : i32
    %c0_i32_1 = arith.constant 0 : i32
    return %c0_i32, %c0_i32_0 : i32, i32
  }
  func.func @transform_8(%arg0: i32) -> (i32, i32) {
    %c0_i32 = arith.constant 0 : i32
    %c0_i32_0 = arith.constant 0 : i32
    return %arg0, %c0_i32 : i32, i32
  }
  func.func @transform_9(%arg0: i32) -> (i32, i32) {
    %c0_i32 = arith.constant 0 : i32
    %c0_i32_0 = arith.constant 0 : i32
    return %arg0, %c0_i32 : i32, i32
  }
  func.func @transform_10(%arg0: i32) -> (i32, i32) {
    %c0_i32 = arith.constant 0 : i32
    %c0_i32_0 = arith.constant 0 : i32
    return %arg0, %c0_i32 : i32, i32
  }
}

module attributes {stable_mosaic.version = 11 : i64} {
  func.func @_attn_proj_kernel(%arg0: i32, %arg1: i32, %arg2: memref<1x16x128xbf16, #tpu.memory_space<vmem>>, %arg3: memref<1x16x128xbf16, #tpu.memory_space<vmem>>, %arg4: memref<1x16x128xbf16, #tpu.memory_space<vmem>>, %arg5: memref<128x128xbf16, #tpu.memory_space<vmem>>, %arg6: memref<1x128xf32, #tpu.memory_space<vmem>>, %arg7: memref<1x16x128xf32, #tpu.memory_space<vmem>>) attributes {dimension_semantics = [#tpu.dimension_semantics<parallel>, #tpu.dimension_semantics<parallel>], iteration_bounds = array<i64: 2, 1>, scalar_prefetch = 0 : i64, scratch_operands = 0 : i64, tpu.core_type = #tpu.core_type<tc>, window_params = [{transform_indices = @transform_0, window_bounds = array<i64: 1, 16, 128>}, {transform_indices = @transform_1, window_bounds = array<i64: 1, 16, 128>}, {transform_indices = @transform_2, window_bounds = array<i64: 1, 16, 128>}, {pipeline_mode = #tpu.pipeline_mode<synchronous>, transform_indices = @transform_3, window_bounds = array<i64: 128, 128>}, {pipeline_mode = #tpu.pipeline_mode<synchronous>, transform_indices = @transform_4, window_bounds = array<i64: 1, 128>}, {transform_indices = @transform_5, window_bounds = array<i64: 1, 16, 128>}]} {
    %c0 = arith.constant 0 : index
    %c0_0 = arith.constant 0 : index
    %c0_1 = arith.constant 0 : index
    %0 = vector.load %arg2[%c0, %c0_0, %c0_1] : memref<1x16x128xbf16, #tpu.memory_space<vmem>>, vector<1x16x128xbf16>
    %1 = vector.shape_cast %0 : vector<1x16x128xbf16> to vector<16x128xbf16>
    %c0_2 = arith.constant 0 : index
    %c0_3 = arith.constant 0 : index
    %c0_4 = arith.constant 0 : index
    %2 = vector.load %arg3[%c0_2, %c0_3, %c0_4] : memref<1x16x128xbf16, #tpu.memory_space<vmem>>, vector<1x16x128xbf16>
    %3 = vector.shape_cast %2 : vector<1x16x128xbf16> to vector<16x128xbf16>
    %c0_5 = arith.constant 0 : index
    %c0_6 = arith.constant 0 : index
    %c0_7 = arith.constant 0 : index
    %4 = vector.load %arg4[%c0_5, %c0_6, %c0_7] : memref<1x16x128xbf16, #tpu.memory_space<vmem>>, vector<1x16x128xbf16>
    %5 = vector.shape_cast %4 : vector<1x16x128xbf16> to vector<16x128xbf16>
    %c0_8 = arith.constant 0 : index
    %c0_9 = arith.constant 0 : index
    %6 = vector.load %arg5[%c0_8, %c0_9] : memref<128x128xbf16, #tpu.memory_space<vmem>>, vector<128x128xbf16>
    %7 = vector.extract_strided_slice %1 {offsets = [0, 0], sizes = [16, 16], strides = [1, 1]} : vector<16x128xbf16> to vector<16x16xbf16>
    %8 = vector.extract_strided_slice %3 {offsets = [0, 0], sizes = [16, 16], strides = [1, 1]} : vector<16x128xbf16> to vector<16x16xbf16>
    %cst = arith.constant dense<0.000000e+00> : vector<16x16xf32>
    %9 = tpu.matmul %7, %8, %cst {dimension_numbers = #tpu.dot_dimension_numbers<[1], [1], [0], [0], [0, 0, 1, 0], [], []>} : vector<16x16xbf16>, vector<16x16xbf16>, vector<16x16xf32> -> vector<16x16xf32>
    %cst_10 = arith.constant dense<0xFF800000> : vector<16xf32>
    %10 = vector.multi_reduction <maximumf>, %9, %cst_10 [1] : vector<16x16xf32> to vector<16xf32>
    %11 = vector.shape_cast %10 : vector<16xf32> to vector<16x1xf32>
    %12 = vector.broadcast %11 : vector<16x1xf32> to vector<16x16xf32>
    %13 = arith.subf %9, %12 : vector<16x16xf32>
    %14 = math.exp %13 : vector<16x16xf32>
    %cst_11 = arith.constant dense<0.000000e+00> : vector<16xf32>
    %15 = vector.multi_reduction <add>, %14, %cst_11 [1] : vector<16x16xf32> to vector<16xf32>
    %16 = vector.shape_cast %15 : vector<16xf32> to vector<16x1xf32>
    %17 = tpu.reciprocal %16 {approx = true} : vector<16x1xf32> -> vector<16x1xf32>
    %18 = vector.broadcast %17 : vector<16x1xf32> to vector<16x16xf32>
    %19 = arith.mulf %14, %18 : vector<16x16xf32>
    %20 = arith.truncf %19 : vector<16x16xf32> to vector<16x16xbf16>
    %21 = vector.extract_strided_slice %5 {offsets = [0, 0], sizes = [16, 16], strides = [1, 1]} : vector<16x128xbf16> to vector<16x16xbf16>
    %cst_12 = arith.constant dense<0.000000e+00> : vector<16x16xf32>
    %22 = tpu.matmul %20, %21, %cst_12 {dimension_numbers = #tpu.dot_dimension_numbers<[1], [0], [0], [1], [0, 0, 1, 1], [], []>} : vector<16x16xbf16>, vector<16x16xbf16>, vector<16x16xf32> -> vector<16x16xf32>
    %23 = arith.truncf %22 : vector<16x16xf32> to vector<16x16xbf16>
    %24 = vector.extract_strided_slice %6 {offsets = [0, 0], sizes = [16, 128], strides = [1, 1]} : vector<128x128xbf16> to vector<16x128xbf16>
    %cst_13 = arith.constant dense<0.000000e+00> : vector<16x128xf32>
    %25 = tpu.matmul %23, %24, %cst_13 {dimension_numbers = #tpu.dot_dimension_numbers<[1], [0], [0], [1], [0, 0, 1, 1], [], []>} : vector<16x16xbf16>, vector<16x128xbf16>, vector<16x128xf32> -> vector<16x128xf32>
    %26 = vector.extract_strided_slice %1 {offsets = [0, 16], sizes = [16, 16], strides = [1, 1]} : vector<16x128xbf16> to vector<16x16xbf16>
    %27 = vector.extract_strided_slice %3 {offsets = [0, 16], sizes = [16, 16], strides = [1, 1]} : vector<16x128xbf16> to vector<16x16xbf16>
    %cst_14 = arith.constant dense<0.000000e+00> : vector<16x16xf32>
    %28 = tpu.matmul %26, %27, %cst_14 {dimension_numbers = #tpu.dot_dimension_numbers<[1], [1], [0], [0], [0, 0, 1, 0], [], []>} : vector<16x16xbf16>, vector<16x16xbf16>, vector<16x16xf32> -> vector<16x16xf32>
    %cst_15 = arith.constant dense<0xFF800000> : vector<16xf32>
    %29 = vector.multi_reduction <maximumf>, %28, %cst_15 [1] : vector<16x16xf32> to vector<16xf32>
    %30 = vector.shape_cast %29 : vector<16xf32> to vector<16x1xf32>
    %31 = vector.broadcast %30 : vector<16x1xf32> to vector<16x16xf32>
    %32 = arith.subf %28, %31 : vector<16x16xf32>
    %33 = math.exp %32 : vector<16x16xf32>
    %cst_16 = arith.constant dense<0.000000e+00> : vector<16xf32>
    %34 = vector.multi_reduction <add>, %33, %cst_16 [1] : vector<16x16xf32> to vector<16xf32>
    %35 = vector.shape_cast %34 : vector<16xf32> to vector<16x1xf32>
    %36 = tpu.reciprocal %35 {approx = true} : vector<16x1xf32> -> vector<16x1xf32>
    %37 = vector.broadcast %36 : vector<16x1xf32> to vector<16x16xf32>
    %38 = arith.mulf %33, %37 : vector<16x16xf32>
    %39 = arith.truncf %38 : vector<16x16xf32> to vector<16x16xbf16>
    %40 = vector.extract_strided_slice %5 {offsets = [0, 16], sizes = [16, 16], strides = [1, 1]} : vector<16x128xbf16> to vector<16x16xbf16>
    %cst_17 = arith.constant dense<0.000000e+00> : vector<16x16xf32>
    %41 = tpu.matmul %39, %40, %cst_17 {dimension_numbers = #tpu.dot_dimension_numbers<[1], [0], [0], [1], [0, 0, 1, 1], [], []>} : vector<16x16xbf16>, vector<16x16xbf16>, vector<16x16xf32> -> vector<16x16xf32>
    %42 = arith.truncf %41 : vector<16x16xf32> to vector<16x16xbf16>
    %43 = vector.extract_strided_slice %6 {offsets = [16, 0], sizes = [16, 128], strides = [1, 1]} : vector<128x128xbf16> to vector<16x128xbf16>
    %cst_18 = arith.constant dense<0.000000e+00> : vector<16x128xf32>
    %44 = tpu.matmul %42, %43, %cst_18 {dimension_numbers = #tpu.dot_dimension_numbers<[1], [0], [0], [1], [0, 0, 1, 1], [], []>} : vector<16x16xbf16>, vector<16x128xbf16>, vector<16x128xf32> -> vector<16x128xf32>
    %45 = arith.addf %25, %44 : vector<16x128xf32>
    %46 = vector.extract_strided_slice %1 {offsets = [0, 32], sizes = [16, 16], strides = [1, 1]} : vector<16x128xbf16> to vector<16x16xbf16>
    %47 = vector.extract_strided_slice %3 {offsets = [0, 32], sizes = [16, 16], strides = [1, 1]} : vector<16x128xbf16> to vector<16x16xbf16>
    %cst_19 = arith.constant dense<0.000000e+00> : vector<16x16xf32>
    %48 = tpu.matmul %46, %47, %cst_19 {dimension_numbers = #tpu.dot_dimension_numbers<[1], [1], [0], [0], [0, 0, 1, 0], [], []>} : vector<16x16xbf16>, vector<16x16xbf16>, vector<16x16xf32> -> vector<16x16xf32>
    %cst_20 = arith.constant dense<0xFF800000> : vector<16xf32>
    %49 = vector.multi_reduction <maximumf>, %48, %cst_20 [1] : vector<16x16xf32> to vector<16xf32>
    %50 = vector.shape_cast %49 : vector<16xf32> to vector<16x1xf32>
    %51 = vector.broadcast %50 : vector<16x1xf32> to vector<16x16xf32>
    %52 = arith.subf %48, %51 : vector<16x16xf32>
    %53 = math.exp %52 : vector<16x16xf32>
    %cst_21 = arith.constant dense<0.000000e+00> : vector<16xf32>
    %54 = vector.multi_reduction <add>, %53, %cst_21 [1] : vector<16x16xf32> to vector<16xf32>
    %55 = vector.shape_cast %54 : vector<16xf32> to vector<16x1xf32>
    %56 = tpu.reciprocal %55 {approx = true} : vector<16x1xf32> -> vector<16x1xf32>
    %57 = vector.broadcast %56 : vector<16x1xf32> to vector<16x16xf32>
    %58 = arith.mulf %53, %57 : vector<16x16xf32>
    %59 = arith.truncf %58 : vector<16x16xf32> to vector<16x16xbf16>
    %60 = vector.extract_strided_slice %5 {offsets = [0, 32], sizes = [16, 16], strides = [1, 1]} : vector<16x128xbf16> to vector<16x16xbf16>
    %cst_22 = arith.constant dense<0.000000e+00> : vector<16x16xf32>
    %61 = tpu.matmul %59, %60, %cst_22 {dimension_numbers = #tpu.dot_dimension_numbers<[1], [0], [0], [1], [0, 0, 1, 1], [], []>} : vector<16x16xbf16>, vector<16x16xbf16>, vector<16x16xf32> -> vector<16x16xf32>
    %62 = arith.truncf %61 : vector<16x16xf32> to vector<16x16xbf16>
    %63 = vector.extract_strided_slice %6 {offsets = [32, 0], sizes = [16, 128], strides = [1, 1]} : vector<128x128xbf16> to vector<16x128xbf16>
    %cst_23 = arith.constant dense<0.000000e+00> : vector<16x128xf32>
    %64 = tpu.matmul %62, %63, %cst_23 {dimension_numbers = #tpu.dot_dimension_numbers<[1], [0], [0], [1], [0, 0, 1, 1], [], []>} : vector<16x16xbf16>, vector<16x128xbf16>, vector<16x128xf32> -> vector<16x128xf32>
    %65 = arith.addf %45, %64 : vector<16x128xf32>
    %66 = vector.extract_strided_slice %1 {offsets = [0, 48], sizes = [16, 16], strides = [1, 1]} : vector<16x128xbf16> to vector<16x16xbf16>
    %67 = vector.extract_strided_slice %3 {offsets = [0, 48], sizes = [16, 16], strides = [1, 1]} : vector<16x128xbf16> to vector<16x16xbf16>
    %cst_24 = arith.constant dense<0.000000e+00> : vector<16x16xf32>
    %68 = tpu.matmul %66, %67, %cst_24 {dimension_numbers = #tpu.dot_dimension_numbers<[1], [1], [0], [0], [0, 0, 1, 0], [], []>} : vector<16x16xbf16>, vector<16x16xbf16>, vector<16x16xf32> -> vector<16x16xf32>
    %cst_25 = arith.constant dense<0xFF800000> : vector<16xf32>
    %69 = vector.multi_reduction <maximumf>, %68, %cst_25 [1] : vector<16x16xf32> to vector<16xf32>
    %70 = vector.shape_cast %69 : vector<16xf32> to vector<16x1xf32>
    %71 = vector.broadcast %70 : vector<16x1xf32> to vector<16x16xf32>
    %72 = arith.subf %68, %71 : vector<16x16xf32>
    %73 = math.exp %72 : vector<16x16xf32>
    %cst_26 = arith.constant dense<0.000000e+00> : vector<16xf32>
    %74 = vector.multi_reduction <add>, %73, %cst_26 [1] : vector<16x16xf32> to vector<16xf32>
    %75 = vector.shape_cast %74 : vector<16xf32> to vector<16x1xf32>
    %76 = tpu.reciprocal %75 {approx = true} : vector<16x1xf32> -> vector<16x1xf32>
    %77 = vector.broadcast %76 : vector<16x1xf32> to vector<16x16xf32>
    %78 = arith.mulf %73, %77 : vector<16x16xf32>
    %79 = arith.truncf %78 : vector<16x16xf32> to vector<16x16xbf16>
    %80 = vector.extract_strided_slice %5 {offsets = [0, 48], sizes = [16, 16], strides = [1, 1]} : vector<16x128xbf16> to vector<16x16xbf16>
    %cst_27 = arith.constant dense<0.000000e+00> : vector<16x16xf32>
    %81 = tpu.matmul %79, %80, %cst_27 {dimension_numbers = #tpu.dot_dimension_numbers<[1], [0], [0], [1], [0, 0, 1, 1], [], []>} : vector<16x16xbf16>, vector<16x16xbf16>, vector<16x16xf32> -> vector<16x16xf32>
    %82 = arith.truncf %81 : vector<16x16xf32> to vector<16x16xbf16>
    %83 = vector.extract_strided_slice %6 {offsets = [48, 0], sizes = [16, 128], strides = [1, 1]} : vector<128x128xbf16> to vector<16x128xbf16>
    %cst_28 = arith.constant dense<0.000000e+00> : vector<16x128xf32>
    %84 = tpu.matmul %82, %83, %cst_28 {dimension_numbers = #tpu.dot_dimension_numbers<[1], [0], [0], [1], [0, 0, 1, 1], [], []>} : vector<16x16xbf16>, vector<16x128xbf16>, vector<16x128xf32> -> vector<16x128xf32>
    %85 = arith.addf %65, %84 : vector<16x128xf32>
    %86 = vector.extract_strided_slice %1 {offsets = [0, 64], sizes = [16, 16], strides = [1, 1]} : vector<16x128xbf16> to vector<16x16xbf16>
    %87 = vector.extract_strided_slice %3 {offsets = [0, 64], sizes = [16, 16], strides = [1, 1]} : vector<16x128xbf16> to vector<16x16xbf16>
    %cst_29 = arith.constant dense<0.000000e+00> : vector<16x16xf32>
    %88 = tpu.matmul %86, %87, %cst_29 {dimension_numbers = #tpu.dot_dimension_numbers<[1], [1], [0], [0], [0, 0, 1, 0], [], []>} : vector<16x16xbf16>, vector<16x16xbf16>, vector<16x16xf32> -> vector<16x16xf32>
    %cst_30 = arith.constant dense<0xFF800000> : vector<16xf32>
    %89 = vector.multi_reduction <maximumf>, %88, %cst_30 [1] : vector<16x16xf32> to vector<16xf32>
    %90 = vector.shape_cast %89 : vector<16xf32> to vector<16x1xf32>
    %91 = vector.broadcast %90 : vector<16x1xf32> to vector<16x16xf32>
    %92 = arith.subf %88, %91 : vector<16x16xf32>
    %93 = math.exp %92 : vector<16x16xf32>
    %cst_31 = arith.constant dense<0.000000e+00> : vector<16xf32>
    %94 = vector.multi_reduction <add>, %93, %cst_31 [1] : vector<16x16xf32> to vector<16xf32>
    %95 = vector.shape_cast %94 : vector<16xf32> to vector<16x1xf32>
    %96 = tpu.reciprocal %95 {approx = true} : vector<16x1xf32> -> vector<16x1xf32>
    %97 = vector.broadcast %96 : vector<16x1xf32> to vector<16x16xf32>
    %98 = arith.mulf %93, %97 : vector<16x16xf32>
    %99 = arith.truncf %98 : vector<16x16xf32> to vector<16x16xbf16>
    %100 = vector.extract_strided_slice %5 {offsets = [0, 64], sizes = [16, 16], strides = [1, 1]} : vector<16x128xbf16> to vector<16x16xbf16>
    %cst_32 = arith.constant dense<0.000000e+00> : vector<16x16xf32>
    %101 = tpu.matmul %99, %100, %cst_32 {dimension_numbers = #tpu.dot_dimension_numbers<[1], [0], [0], [1], [0, 0, 1, 1], [], []>} : vector<16x16xbf16>, vector<16x16xbf16>, vector<16x16xf32> -> vector<16x16xf32>
    %102 = arith.truncf %101 : vector<16x16xf32> to vector<16x16xbf16>
    %103 = vector.extract_strided_slice %6 {offsets = [64, 0], sizes = [16, 128], strides = [1, 1]} : vector<128x128xbf16> to vector<16x128xbf16>
    %cst_33 = arith.constant dense<0.000000e+00> : vector<16x128xf32>
    %104 = tpu.matmul %102, %103, %cst_33 {dimension_numbers = #tpu.dot_dimension_numbers<[1], [0], [0], [1], [0, 0, 1, 1], [], []>} : vector<16x16xbf16>, vector<16x128xbf16>, vector<16x128xf32> -> vector<16x128xf32>
    %105 = arith.addf %85, %104 : vector<16x128xf32>
    %106 = vector.extract_strided_slice %1 {offsets = [0, 80], sizes = [16, 16], strides = [1, 1]} : vector<16x128xbf16> to vector<16x16xbf16>
    %107 = vector.extract_strided_slice %3 {offsets = [0, 80], sizes = [16, 16], strides = [1, 1]} : vector<16x128xbf16> to vector<16x16xbf16>
    %cst_34 = arith.constant dense<0.000000e+00> : vector<16x16xf32>
    %108 = tpu.matmul %106, %107, %cst_34 {dimension_numbers = #tpu.dot_dimension_numbers<[1], [1], [0], [0], [0, 0, 1, 0], [], []>} : vector<16x16xbf16>, vector<16x16xbf16>, vector<16x16xf32> -> vector<16x16xf32>
    %cst_35 = arith.constant dense<0xFF800000> : vector<16xf32>
    %109 = vector.multi_reduction <maximumf>, %108, %cst_35 [1] : vector<16x16xf32> to vector<16xf32>
    %110 = vector.shape_cast %109 : vector<16xf32> to vector<16x1xf32>
    %111 = vector.broadcast %110 : vector<16x1xf32> to vector<16x16xf32>
    %112 = arith.subf %108, %111 : vector<16x16xf32>
    %113 = math.exp %112 : vector<16x16xf32>
    %cst_36 = arith.constant dense<0.000000e+00> : vector<16xf32>
    %114 = vector.multi_reduction <add>, %113, %cst_36 [1] : vector<16x16xf32> to vector<16xf32>
    %115 = vector.shape_cast %114 : vector<16xf32> to vector<16x1xf32>
    %116 = tpu.reciprocal %115 {approx = true} : vector<16x1xf32> -> vector<16x1xf32>
    %117 = vector.broadcast %116 : vector<16x1xf32> to vector<16x16xf32>
    %118 = arith.mulf %113, %117 : vector<16x16xf32>
    %119 = arith.truncf %118 : vector<16x16xf32> to vector<16x16xbf16>
    %120 = vector.extract_strided_slice %5 {offsets = [0, 80], sizes = [16, 16], strides = [1, 1]} : vector<16x128xbf16> to vector<16x16xbf16>
    %cst_37 = arith.constant dense<0.000000e+00> : vector<16x16xf32>
    %121 = tpu.matmul %119, %120, %cst_37 {dimension_numbers = #tpu.dot_dimension_numbers<[1], [0], [0], [1], [0, 0, 1, 1], [], []>} : vector<16x16xbf16>, vector<16x16xbf16>, vector<16x16xf32> -> vector<16x16xf32>
    %122 = arith.truncf %121 : vector<16x16xf32> to vector<16x16xbf16>
    %123 = vector.extract_strided_slice %6 {offsets = [80, 0], sizes = [16, 128], strides = [1, 1]} : vector<128x128xbf16> to vector<16x128xbf16>
    %cst_38 = arith.constant dense<0.000000e+00> : vector<16x128xf32>
    %124 = tpu.matmul %122, %123, %cst_38 {dimension_numbers = #tpu.dot_dimension_numbers<[1], [0], [0], [1], [0, 0, 1, 1], [], []>} : vector<16x16xbf16>, vector<16x128xbf16>, vector<16x128xf32> -> vector<16x128xf32>
    %125 = arith.addf %105, %124 : vector<16x128xf32>
    %126 = vector.extract_strided_slice %1 {offsets = [0, 96], sizes = [16, 16], strides = [1, 1]} : vector<16x128xbf16> to vector<16x16xbf16>
    %127 = vector.extract_strided_slice %3 {offsets = [0, 96], sizes = [16, 16], strides = [1, 1]} : vector<16x128xbf16> to vector<16x16xbf16>
    %cst_39 = arith.constant dense<0.000000e+00> : vector<16x16xf32>
    %128 = tpu.matmul %126, %127, %cst_39 {dimension_numbers = #tpu.dot_dimension_numbers<[1], [1], [0], [0], [0, 0, 1, 0], [], []>} : vector<16x16xbf16>, vector<16x16xbf16>, vector<16x16xf32> -> vector<16x16xf32>
    %cst_40 = arith.constant dense<0xFF800000> : vector<16xf32>
    %129 = vector.multi_reduction <maximumf>, %128, %cst_40 [1] : vector<16x16xf32> to vector<16xf32>
    %130 = vector.shape_cast %129 : vector<16xf32> to vector<16x1xf32>
    %131 = vector.broadcast %130 : vector<16x1xf32> to vector<16x16xf32>
    %132 = arith.subf %128, %131 : vector<16x16xf32>
    %133 = math.exp %132 : vector<16x16xf32>
    %cst_41 = arith.constant dense<0.000000e+00> : vector<16xf32>
    %134 = vector.multi_reduction <add>, %133, %cst_41 [1] : vector<16x16xf32> to vector<16xf32>
    %135 = vector.shape_cast %134 : vector<16xf32> to vector<16x1xf32>
    %136 = tpu.reciprocal %135 {approx = true} : vector<16x1xf32> -> vector<16x1xf32>
    %137 = vector.broadcast %136 : vector<16x1xf32> to vector<16x16xf32>
    %138 = arith.mulf %133, %137 : vector<16x16xf32>
    %139 = arith.truncf %138 : vector<16x16xf32> to vector<16x16xbf16>
    %140 = vector.extract_strided_slice %5 {offsets = [0, 96], sizes = [16, 16], strides = [1, 1]} : vector<16x128xbf16> to vector<16x16xbf16>
    %cst_42 = arith.constant dense<0.000000e+00> : vector<16x16xf32>
    %141 = tpu.matmul %139, %140, %cst_42 {dimension_numbers = #tpu.dot_dimension_numbers<[1], [0], [0], [1], [0, 0, 1, 1], [], []>} : vector<16x16xbf16>, vector<16x16xbf16>, vector<16x16xf32> -> vector<16x16xf32>
    %142 = arith.truncf %141 : vector<16x16xf32> to vector<16x16xbf16>
    %143 = vector.extract_strided_slice %6 {offsets = [96, 0], sizes = [16, 128], strides = [1, 1]} : vector<128x128xbf16> to vector<16x128xbf16>
    %cst_43 = arith.constant dense<0.000000e+00> : vector<16x128xf32>
    %144 = tpu.matmul %142, %143, %cst_43 {dimension_numbers = #tpu.dot_dimension_numbers<[1], [0], [0], [1], [0, 0, 1, 1], [], []>} : vector<16x16xbf16>, vector<16x128xbf16>, vector<16x128xf32> -> vector<16x128xf32>
    %145 = arith.addf %125, %144 : vector<16x128xf32>
    %146 = vector.extract_strided_slice %1 {offsets = [0, 112], sizes = [16, 16], strides = [1, 1]} : vector<16x128xbf16> to vector<16x16xbf16>
    %147 = vector.extract_strided_slice %3 {offsets = [0, 112], sizes = [16, 16], strides = [1, 1]} : vector<16x128xbf16> to vector<16x16xbf16>
    %cst_44 = arith.constant dense<0.000000e+00> : vector<16x16xf32>
    %148 = tpu.matmul %146, %147, %cst_44 {dimension_numbers = #tpu.dot_dimension_numbers<[1], [1], [0], [0], [0, 0, 1, 0], [], []>} : vector<16x16xbf16>, vector<16x16xbf16>, vector<16x16xf32> -> vector<16x16xf32>
    %cst_45 = arith.constant dense<0xFF800000> : vector<16xf32>
    %149 = vector.multi_reduction <maximumf>, %148, %cst_45 [1] : vector<16x16xf32> to vector<16xf32>
    %150 = vector.shape_cast %149 : vector<16xf32> to vector<16x1xf32>
    %151 = vector.broadcast %150 : vector<16x1xf32> to vector<16x16xf32>
    %152 = arith.subf %148, %151 : vector<16x16xf32>
    %153 = math.exp %152 : vector<16x16xf32>
    %cst_46 = arith.constant dense<0.000000e+00> : vector<16xf32>
    %154 = vector.multi_reduction <add>, %153, %cst_46 [1] : vector<16x16xf32> to vector<16xf32>
    %155 = vector.shape_cast %154 : vector<16xf32> to vector<16x1xf32>
    %156 = tpu.reciprocal %155 {approx = true} : vector<16x1xf32> -> vector<16x1xf32>
    %157 = vector.broadcast %156 : vector<16x1xf32> to vector<16x16xf32>
    %158 = arith.mulf %153, %157 : vector<16x16xf32>
    %159 = arith.truncf %158 : vector<16x16xf32> to vector<16x16xbf16>
    %160 = vector.extract_strided_slice %5 {offsets = [0, 112], sizes = [16, 16], strides = [1, 1]} : vector<16x128xbf16> to vector<16x16xbf16>
    %cst_47 = arith.constant dense<0.000000e+00> : vector<16x16xf32>
    %161 = tpu.matmul %159, %160, %cst_47 {dimension_numbers = #tpu.dot_dimension_numbers<[1], [0], [0], [1], [0, 0, 1, 1], [], []>} : vector<16x16xbf16>, vector<16x16xbf16>, vector<16x16xf32> -> vector<16x16xf32>
    %162 = arith.truncf %161 : vector<16x16xf32> to vector<16x16xbf16>
    %163 = vector.extract_strided_slice %6 {offsets = [112, 0], sizes = [16, 128], strides = [1, 1]} : vector<128x128xbf16> to vector<16x128xbf16>
    %cst_48 = arith.constant dense<0.000000e+00> : vector<16x128xf32>
    %164 = tpu.matmul %162, %163, %cst_48 {dimension_numbers = #tpu.dot_dimension_numbers<[1], [0], [0], [1], [0, 0, 1, 1], [], []>} : vector<16x16xbf16>, vector<16x128xbf16>, vector<16x128xf32> -> vector<16x128xf32>
    %165 = arith.addf %145, %164 : vector<16x128xf32>
    %c0_49 = arith.constant 0 : index
    %c0_50 = arith.constant 0 : index
    %166 = vector.load %arg6[%c0_49, %c0_50] : memref<1x128xf32, #tpu.memory_space<vmem>>, vector<1x128xf32>
    %167 = vector.broadcast %166 : vector<1x128xf32> to vector<16x128xf32>
    %168 = arith.addf %165, %167 : vector<16x128xf32>
    %c0_51 = arith.constant 0 : index
    %c0_52 = arith.constant 0 : index
    %c0_53 = arith.constant 0 : index
    %169 = vector.load %arg7[%c0_51, %c0_52, %c0_53] : memref<1x16x128xf32, #tpu.memory_space<vmem>>, vector<1x16x128xf32>
    %170 = vector.shape_cast %169 : vector<1x16x128xf32> to vector<16x128xf32>
    %171 = vector.shape_cast %168 : vector<16x128xf32> to vector<1x16x128xf32>
    tpu.vector_store %arg7[%c0_51, %c0_52, %c0_53], %171 {strides = array<i32>} : memref<1x16x128xf32, #tpu.memory_space<vmem>>, vector<1x16x128xf32>,
    return
  }
  func.func @transform_0(%arg0: i32, %arg1: i32) -> (i32, i32, i32) {
    %c0_i32 = arith.constant 0 : i32
    %c0_i32_0 = arith.constant 0 : i32
    return %arg0, %arg1, %c0_i32 : i32, i32, i32
  }
  func.func @transform_1(%arg0: i32, %arg1: i32) -> (i32, i32, i32) {
    %c0_i32 = arith.constant 0 : i32
    %c0_i32_0 = arith.constant 0 : i32
    %c0_i32_1 = arith.constant 0 : i32
    return %arg0, %c0_i32, %c0_i32_0 : i32, i32, i32
  }
  func.func @transform_2(%arg0: i32, %arg1: i32) -> (i32, i32, i32) {
    %c0_i32 = arith.constant 0 : i32
    %c0_i32_0 = arith.constant 0 : i32
    %c0_i32_1 = arith.constant 0 : i32
    return %arg0, %c0_i32, %c0_i32_0 : i32, i32, i32
  }
  func.func @transform_3(%arg0: i32, %arg1: i32) -> (i32, i32) {
    %c0_i32 = arith.constant 0 : i32
    %c0_i32_0 = arith.constant 0 : i32
    %c0_i32_1 = arith.constant 0 : i32
    return %c0_i32, %c0_i32_0 : i32, i32
  }
  func.func @transform_4(%arg0: i32, %arg1: i32) -> (i32, i32) {
    %c0_i32 = arith.constant 0 : i32
    %c0_i32_0 = arith.constant 0 : i32
    %c0_i32_1 = arith.constant 0 : i32
    return %c0_i32, %c0_i32_0 : i32, i32
  }
  func.func @transform_5(%arg0: i32, %arg1: i32) -> (i32, i32, i32) {
    %c0_i32 = arith.constant 0 : i32
    %c0_i32_0 = arith.constant 0 : i32
    return %arg0, %arg1, %c0_i32 : i32, i32, i32
  }
}

</mosaic_0001>

<llo_original>
// kernel: cross_attention_forward.2
$region0: #{cross_attention_forward.2}
  #allocation0 [shape = 'u32[]', space=smem, size = 0x4, offset = 0x4, fixed_abs, tag = 'smem constant byte address 0x4 - core index']
  #allocation1 [shape = 'u32[72,128]{1,0:T(1,128)}', space=vmem, size = 0x9000, scoped, tag = 'internal scratch']
  %s0 = inlined_call_operand.hbm [shape: f32[32,128], index: 0, kind: input, shape index: {}]
  %s1 = inlined_call_operand.hbm [shape: f32[32,128], index: 1, kind: input, shape index: {}]
  %s2 = inlined_call_operand.hbm [shape: bf16[128,128], index: 2, kind: input, shape index: {}]
  %s3 = inlined_call_operand.hbm [shape: bf16[128,128], index: 3, kind: input, shape index: {}]
  %s4 = inlined_call_operand.hbm [shape: bf16[128,128], index: 4, kind: input, shape index: {}]
  %s5 = inlined_call_operand.vmem [shape: f32[1,128], index: 5, kind: input, shape index: {}]
  %s6 = inlined_call_operand.hbm [shape: f32[1,128], index: 6, kind: input, shape index: {}]
  %s7 = inlined_call_operand.vmem [shape: f32[1,128], index: 7, kind: input, shape index: {}]
  %s8 = inlined_call_operand.vmem [shape: bf16[32,128], index: 8, kind: output, shape index: {0}]
  %s9 = inlined_call_operand.vmem [shape: bf16[32,128], index: 9, kind: output, shape index: {1}]
  %s10 = inlined_call_operand.vmem [shape: bf16[32,128], index: 10, kind: output, shape index: {2}]
  %11 = xla_tuple %s8, %s9, %s10
  %s12 = sld [smem:[#allocation0]]
  $region82: #{cross_attention_forward.2} parent=0
    _
  %s14 = ssub.s32 1, %s12
  %s15 = scalar_select 0, %s14, %s12
  $region1: #{cross_attention_forward.2} parent=0
    #allocation2 [shape = 'u8[16384]{0}', space=vmem, size = 0x4000, scoped, tag = 'input window, operand 0, single buffered']
    #allocation3 [shape = 's32[1]{0}', space=sflag, size = 0x4, scoped, tag = 'scoped memory for cross_attention_forward.2']
    #allocation4 [shape = 'u8[16384]{0}', space=vmem, size = 0x4000, scoped, tag = 'input window, operand 1, single buffered']
    #allocation5 [shape = 's32[1]{0}', space=sflag, size = 0x4, scoped, tag = 'scoped memory for cross_attention_forward.2']
    #allocation6 [shape = 'u8[32768]{0}', space=vmem, size = 0x8000, scoped, tag = 'input window, operand 2, single buffered']
    #allocation7 [shape = 'u8[32768]{0}', space=vmem, size = 0x8000, scoped, tag = 'input window, operand 3, single buffered']
    #allocation8 [shape = 's32[1]{0}', space=sflag, size = 0x4, scoped, tag = 'scoped memory for cross_attention_forward.2']
    #allocation9 [shape = 'u8[32768]{0}', space=vmem, size = 0x8000, scoped, tag = 'input window, operand 4, single buffered']
    #allocation10 [shape = 'u8[512]{0}', space=vmem, size = 0x400, scoped, tag = 'input window, operand 6, single buffered']
    #allocation11 [shape = 's32[1]{0}', space=sflag, size = 0x4, scoped, tag = 'scoped memory for cross_attention_forward.2']
    %16 = vsyncpa [#allocation3], 0
    %17 = vsyncpa [#allocation5], 0
    %18 = vsyncpa [#allocation8], 0
    %19 = vsyncpa [#allocation11], 0
    // Predicated region
    $region2: #{cross_attention_forward.2} parent=1 // pred_check
      _
    $region3: #{cross_attention_forward.2} parent=1 // pred_check_branch
      %21 = sbr.rel (0) target = $region5
    $region4: #{cross_attention_forward.2} parent=1 // pred_region
      %23 = vsyncadd [#allocation3], 0
      %s24 = sshll.u32 %s0, 4
      %s25 = int_to_ptr.hbm [resolvable:$true] %s24
      %s26 = sshll.u32 [#allocation2], 4
      %s27 = int_to_ptr.vmem [resolvable:$true] %s26
      %32 = dma.hbm_to_vmem [thread:$0]  %s25, 512, %s27, [#allocation3], 128, 128, 8
    $region5: #{cross_attention_forward.2} parent=1 // pred_fallthru
      _
    // Predicated region
    $region6: #{cross_attention_forward.2} parent=1 // pred_check
      _
    $region7: #{cross_attention_forward.2} parent=1 // pred_check_branch
      %34 = sbr.rel (0) target = $region9
    $region8: #{cross_attention_forward.2} parent=1 // pred_region
      %36 = vsyncadd [#allocation5], 0
      %s37 = sshll.u32 %s1, 4
      %s38 = int_to_ptr.hbm [resolvable:$true] %s37
      %s39 = sshll.u32 [#allocation4], 4
      %s40 = int_to_ptr.vmem [resolvable:$true] %s39
      %45 = dma.hbm_to_vmem [thread:$0]  %s38, 512, %s40, [#allocation5], 128, 128, 8
    $region9: #{cross_attention_forward.2} parent=1 // pred_fallthru
      _
    // Predicated region
    $region10: #{cross_attention_forward.2} parent=1 // pred_check
      _
    $region11: #{cross_attention_forward.2} parent=1 // pred_check_branch
      %47 = sbr.rel (0) target = $region13
    $region12: #{cross_attention_forward.2} parent=1 // pred_region
      %49 = vsyncadd [#allocation5], 0
      %s50 = sshll.u32 %s2, 4
      %s51 = int_to_ptr.hbm [resolvable:$true] %s50
      %s52 = sshll.u32 [#allocation6], 4
      %s53 = int_to_ptr.vmem [resolvable:$true] %s52
      %58 = dma.hbm_to_vmem [thread:$0]  %s51, 1024, %s53, [#allocation5], 64, 64, 4
    $region13: #{cross_attention_forward.2} parent=1 // pred_fallthru
      _
    // Predicated region
    $region14: #{cross_attention_forward.2} parent=1 // pred_check
      _
    $region15: #{cross_attention_forward.2} parent=1 // pred_check_branch
      %60 = sbr.rel (0) target = $region17
    $region16: #{cross_attention_forward.2} parent=1 // pred_region
      %62 = vsyncadd [#allocation8], 0
      %s63 = sshll.u32 %s3, 4
      %s64 = int_to_ptr.hbm [resolvable:$true] %s63
      %s65 = sshll.u32 [#allocation7], 4
      %s66 = int_to_ptr.vmem [resolvable:$true] %s65
      %71 = dma.hbm_to_vmem [thread:$0]  %s64, 1024, %s66, [#allocation8], 64, 64, 4
    $region17: #{cross_attention_forward.2} parent=1 // pred_fallthru
      _
    // Predicated region
    $region18: #{cross_attention_forward.2} parent=1 // pred_check
      _
    $region19: #{cross_attention_forward.2} parent=1 // pred_check_branch
      %73 = sbr.rel (0) target = $region21
    $region20: #{cross_attention_forward.2} parent=1 // pred_region
      %75 = vsyncadd [#allocation8], 0
      %s76 = sshll.u32 %s4, 4
      %s77 = int_to_ptr.hbm [resolvable:$true] %s76
      %s78 = sshll.u32 [#allocation9], 4
      %s79 = int_to_ptr.vmem [resolvable:$true] %s78
      %84 = dma.hbm_to_vmem [thread:$0]  %s77, 1024, %s79, [#allocation8], 64, 64, 4
    $region21: #{cross_attention_forward.2} parent=1 // pred_fallthru
      _
    // Predicated region
    $region22: #{cross_attention_forward.2} parent=1 // pred_check
      _
    $region23: #{cross_attention_forward.2} parent=1 // pred_check_branch
      %86 = sbr.rel (0) target = $region25
    $region24: #{cross_attention_forward.2} parent=1 // pred_region
      _
    $region25: #{cross_attention_forward.2} parent=1 // pred_fallthru
      _
    // Predicated region
    $region26: #{cross_attention_forward.2} parent=1 // pred_check
      _
    $region27: #{cross_attention_forward.2} parent=1 // pred_check_branch
      %88 = sbr.rel (0) target = $region29
    $region28: #{cross_attention_forward.2} parent=1 // pred_region
      %90 = vsyncadd [#allocation11], 0
      %s92 = sshll.u32 %s6, 4
      %s93 = int_to_ptr.hbm [resolvable:$true] %s92
      %s94 = sshll.u32 [#allocation10], 4
      %s95 = int_to_ptr.vmem [resolvable:$true] %s94
      %97 = dma.hbm_to_vmem [thread:$0]  %s93, 16, %s95, [#allocation11]
    $region29: #{cross_attention_forward.2} parent=1 // pred_fallthru
      _
    // Predicated region
    $region30: #{cross_attention_forward.2} parent=1 // pred_check
      _
    $region31: #{cross_attention_forward.2} parent=1 // pred_check_branch
      %99 = sbr.rel (0) target = $region33
    $region32: #{cross_attention_forward.2} parent=1 // pred_region
      _
    $region33: #{cross_attention_forward.2} parent=1 // pred_fallthru
      _
    // Predicated region
    $region34: #{cross_attention_forward.2} parent=1 // pred_check
      _
    $region35: #{cross_attention_forward.2} parent=1 // pred_check_branch
      %101 = sbr.rel (0) target = $region37
    $region36: #{cross_attention_forward.2} parent=1 // pred_region
      %103 = dma.done [#allocation3], 512
    $region37: #{cross_attention_forward.2} parent=1 // pred_fallthru
      _
    // Predicated region
    $region38: #{cross_attention_forward.2} parent=1 // pred_check
      _
    $region39: #{cross_attention_forward.2} parent=1 // pred_check_branch
      %105 = sbr.rel (0) target = $region41
    $region40: #{cross_attention_forward.2} parent=1 // pred_region
      %107 = dma.done [#allocation5], 512
    $region41: #{cross_attention_forward.2} parent=1 // pred_fallthru
      _
    // Predicated region
    $region42: #{cross_attention_forward.2} parent=1 // pred_check
      _
    $region43: #{cross_attention_forward.2} parent=1 // pred_check_branch
      %109 = sbr.rel (0) target = $region45
    $region44: #{cross_attention_forward.2} parent=1 // pred_region
      %111 = dma.done [#allocation5], 1024
    $region45: #{cross_attention_forward.2} parent=1 // pred_fallthru
      _
    // Predicated region
    $region46: #{cross_attention_forward.2} parent=1 // pred_check
      _
    $region47: #{cross_attention_forward.2} parent=1 // pred_check_branch
      %113 = sbr.rel (0) target = $region49
    $region48: #{cross_attention_forward.2} parent=1 // pred_region
      %115 = dma.done [#allocation8], 1024
    $region49: #{cross_attention_forward.2} parent=1 // pred_fallthru
      _
    // Predicated region
    $region50: #{cross_attention_forward.2} parent=1 // pred_check
      _
    $region51: #{cross_attention_forward.2} parent=1 // pred_check_branch
      %117 = sbr.rel (0) target = $region53
    $region52: #{cross_attention_forward.2} parent=1 // pred_region
      %119 = dma.done [#allocation8], 1024
    $region53: #{cross_attention_forward.2} parent=1 // pred_fallthru
      _
    // Predicated region
    $region54: #{cross_attention_forward.2} parent=1 // pred_check
      _
    $region55: #{cross_attention_forward.2} parent=1 // pred_check_branch
      %121 = sbr.rel (0) target = $region57
    $region56: #{cross_attention_forward.2} parent=1 // pred_region
      %123 = dma.done [#allocation11], 16
    $region57: #{cross_attention_forward.2} parent=1 // pred_fallthru
      _
    %v124 = vld [vmem:[#allocation2] sm:$0xff]
    %v125 = vld [vmem:[#allocation2 + $0x8] sm:$0xff]
    %v126 = vld [vmem:[#allocation2 + $0x10] sm:$0xff]
    %v127 = vld [vmem:[#allocation2 + $0x18] sm:$0xff]
    %v128 = vpack.c.bf16 %v125, %v124
    %v129 = vpack.c.bf16 %v127, %v126
    %v130 = vld [vmem:[#allocation4] sm:$0xff]
    %v131 = vld [vmem:[#allocation4 + $0x8] sm:$0xff]
    %v132 = vld [vmem:[#allocation4 + $0x10] sm:$0xff]
    %v133 = vld [vmem:[#allocation4 + $0x18] sm:$0xff]
    %v134 = vpack.c.bf16 %v131, %v130
    %v135 = vpack.c.bf16 %v133, %v132
    %v136 = vld [vmem:[#allocation6] sm:$0xf]
    %v137 = vld [vmem:[#allocation6 + $0x4] sm:$0xf]
    %v138 = vld [vmem:[#allocation6 + $0x8] sm:$0xf]
    %v139 = vld [vmem:[#allocation6 + $0xc] sm:$0xf]
    %v140 = vld [vmem:[#allocation6 + $0x10] sm:$0xf]
    %v141 = vld [vmem:[#allocation6 + $0x14] sm:$0xf]
    %v142 = vld [vmem:[#allocation6 + $0x18] sm:$0xf]
    %v143 = vld [vmem:[#allocation6 + $0x1c] sm:$0xf]
    %v144 = vld [vmem:[#allocation6 + $0x20] sm:$0xf]
    %v145 = vld [vmem:[#allocation6 + $0x24] sm:$0xf]
    %v146 = vld [vmem:[#allocation6 + $0x28] sm:$0xf]
    %v147 = vld [vmem:[#allocation6 + $0x2c] sm:$0xf]
    %v148 = vld [vmem:[#allocation6 + $0x30] sm:$0xf]
    %v149 = vld [vmem:[#allocation6 + $0x34] sm:$0xf]
    %v150 = vld [vmem:[#allocation6 + $0x38] sm:$0xf]
    %v151 = vld [vmem:[#allocation6 + $0x3c] sm:$0xf]
    %v152 = vld [vmem:[%s5] sm:$0x1]
    %v154 = vperm.slane %v152, 0
    %v172 = vunpack.c.l.b16 %v136
    %v173 = vunpack.c.l.b16 %v137
    %v174 = vunpack.c.l.b16 %v138
    %v175 = vunpack.c.l.b16 %v139
    %v176 = vunpack.c.l.b16 %v140
    %v177 = vunpack.c.l.b16 %v141
    %v178 = vunpack.c.l.b16 %v142
    %v179 = vunpack.c.l.b16 %v143
    %v180 = vunpack.c.l.b16 %v144
    %v181 = vunpack.c.l.b16 %v145
    %v182 = vunpack.c.l.b16 %v146
    %v183 = vunpack.c.l.b16 %v147
    %v184 = vunpack.c.l.b16 %v148
    %v185 = vunpack.c.l.b16 %v149
    %v186 = vunpack.c.l.b16 %v150
    %v187 = vunpack.c.l.b16 %v151
    %v188 = vpack.c.b16 %v173, %v172
    %v189 = vpack.c.b16 %v175, %v174
    %v190 = vpack.c.b16 %v177, %v176
    %v191 = vpack.c.b16 %v179, %v178
    %v192 = vpack.c.b16 %v181, %v180
    %v193 = vpack.c.b16 %v183, %v182
    %v194 = vpack.c.b16 %v185, %v184
    %v195 = vpack.c.b16 %v187, %v186
    %204 = vmatpush.bf16.msra.mxu0 %v195
    %205 = vmatpush.bf16.msra.mxu0 %v194
    %206 = vmatpush.bf16.msra.mxu0 %v193
    %207 = vmatpush.bf16.msra.mxu0 %v192
    %208 = vmatpush.bf16.msra.mxu0 %v191
    %209 = vmatpush.bf16.msra.mxu0 %v190
    %210 = vmatpush.bf16.msra.mxu0 %v189
    %211 = vmatpush.bf16.msra.mxu0 %v188
    %212 = vmatmul.bf16.gmra.mxu0 %v128
    %v213 = vpop.f32.mrf.mxu0
    %v214 = vadd.f32 %v154, %v213
    %v215 = vpop.f32.mrf.mxu0
    %v216 = vadd.f32 %v154, %v215
    %217 = vmatmul.bf16.gmra.mxu0 %v129
    %v218 = vpop.f32.mrf.mxu0
    %v219 = vadd.f32 %v154, %v218
    %v220 = vpop.f32.mrf.mxu0
    %v221 = vadd.f32 %v154, %v220
    %222 = vdwg.mxu0
    %v223 = vmul.f32 %v214, 0.25
    %v224 = vmul.f32 %v216, 0.25
    %v225 = vmul.f32 %v219, 0.25
    %v226 = vmul.f32 %v221, 0.25
    %v227 = vpack.c.bf16 %v223, %v223
    %v228 = vpack.c.bf16 %v224, %v224
    %v229 = vpack.c.bf16 %v225, %v225
    %v230 = vpack.c.bf16 %v226, %v226
    %231 = vst [vmem:[%s8] sm:$0xf] %v227
    %232 = vst [vmem:[%s8 + $0x4] sm:$0xf] %v228
    %233 = vst [vmem:[%s8 + $0x8] sm:$0xf] %v229
    %234 = vst [vmem:[%s8 + $0xc] sm:$0xf] %v230
    %v235 = vld [vmem:[#allocation7] sm:$0xf]
    %v236 = vld [vmem:[#allocation7 + $0x4] sm:$0xf]
    %v237 = vld [vmem:[#allocation7 + $0x8] sm:$0xf]
    %v238 = vld [vmem:[#allocation7 + $0xc] sm:$0xf]
    %v239 = vld [vmem:[#allocation7 + $0x10] sm:$0xf]
    %v240 = vld [vmem:[#allocation7 + $0x14] sm:$0xf]
    %v241 = vld [vmem:[#allocation7 + $0x18] sm:$0xf]
    %v242 = vld [vmem:[#allocation7 + $0x1c] sm:$0xf]
    %v243 = vld [vmem:[#allocation7 + $0x20] sm:$0xf]
    %v244 = vld [vmem:[#allocation7 + $0x24] sm:$0xf]
    %v245 = vld [vmem:[#allocation7 + $0x28] sm:$0xf]
    %v246 = vld [vmem:[#allocation7 + $0x2c] sm:$0xf]
    %v247 = vld [vmem:[#allocation7 + $0x30] sm:$0xf]
    %v248 = vld [vmem:[#allocation7 + $0x34] sm:$0xf]
    %v249 = vld [vmem:[#allocation7 + $0x38] sm:$0xf]
    %v250 = vld [vmem:[#allocation7 + $0x3c] sm:$0xf]
    %v251 = vld [vmem:[#allocation10] sm:$0x1]
    %v253 = vperm.slane %v251, 0
    %v271 = vunpack.c.l.b16 %v235
    %v272 = vunpack.c.l.b16 %v236
    %v273 = vunpack.c.l.b16 %v237
    %v274 = vunpack.c.l.b16 %v238
    %v275 = vunpack.c.l.b16 %v239
    %v276 = vunpack.c.l.b16 %v240
    %v277 = vunpack.c.l.b16 %v241
    %v278 = vunpack.c.l.b16 %v242
    %v279 = vunpack.c.l.b16 %v243
    %v280 = vunpack.c.l.b16 %v244
    %v281 = vunpack.c.l.b16 %v245
    %v282 = vunpack.c.l.b16 %v246
    %v283 = vunpack.c.l.b16 %v247
    %v284 = vunpack.c.l.b16 %v248
    %v285 = vunpack.c.l.b16 %v249
    %v286 = vunpack.c.l.b16 %v250
    %v287 = vpack.c.b16 %v272, %v271
    %v288 = vpack.c.b16 %v274, %v273
    %v289 = vpack.c.b16 %v276, %v275
    %v290 = vpack.c.b16 %v278, %v277
    %v291 = vpack.c.b16 %v280, %v279
    %v292 = vpack.c.b16 %v282, %v281
    %v293 = vpack.c.b16 %v284, %v283
    %v294 = vpack.c.b16 %v286, %v285
    %303 = vmatpush.bf16.msra.mxu0 %v294
    %304 = vmatpush.bf16.msra.mxu0 %v293
    %305 = vmatpush.bf16.msra.mxu0 %v292
    %306 = vmatpush.bf16.msra.mxu0 %v291
    %307 = vmatpush.bf16.msra.mxu0 %v290
    %308 = vmatpush.bf16.msra.mxu0 %v289
    %309 = vmatpush.bf16.msra.mxu0 %v288
    %310 = vmatpush.bf16.msra.mxu0 %v287
    %311 = vmatmul.bf16.gmra.mxu0 %v134
    %v312 = vpop.f32.mrf.mxu0
    %v313 = vadd.f32 %v253, %v312
    %v314 = vpop.f32.mrf.mxu0
    %v315 = vadd.f32 %v253, %v314
    %316 = vmatmul.bf16.gmra.mxu0 %v135
    %v317 = vpop.f32.mrf.mxu0
    %v318 = vadd.f32 %v253, %v317
    %v319 = vpop.f32.mrf.mxu0
    %v320 = vadd.f32 %v253, %v319
    %321 = vdwg.mxu0
    %v322 = vpack.c.bf16 %v313, %v313
    %v323 = vpack.c.bf16 %v315, %v315
    %v324 = vpack.c.bf16 %v318, %v318
    %v325 = vpack.c.bf16 %v320, %v320
    %326 = vst [vmem:[%s9] sm:$0xf] %v322
    %327 = vst [vmem:[%s9 + $0x4] sm:$0xf] %v323
    %328 = vst [vmem:[%s9 + $0x8] sm:$0xf] %v324
    %329 = vst [vmem:[%s9 + $0xc] sm:$0xf] %v325
    %v330 = vld [vmem:[#allocation9] sm:$0xf]
    %v331 = vld [vmem:[#allocation9 + $0x4] sm:$0xf]
    %v332 = vld [vmem:[#allocation9 + $0x8] sm:$0xf]
    %v333 = vld [vmem:[#allocation9 + $0xc] sm:$0xf]
    %v334 = vld [vmem:[#allocation9 + $0x10] sm:$0xf]
    %v335 = vld [vmem:[#allocation9 + $0x14] sm:$0xf]
    %v336 = vld [vmem:[#allocation9 + $0x18] sm:$0xf]
    %v337 = vld [vmem:[#allocation9 + $0x1c] sm:$0xf]
    %v338 = vld [vmem:[#allocation9 + $0x20] sm:$0xf]
    %v339 = vld [vmem:[#allocation9 + $0x24] sm:$0xf]
    %v340 = vld [vmem:[#allocation9 + $0x28] sm:$0xf]
    %v341 = vld [vmem:[#allocation9 + $0x2c] sm:$0xf]
    %v342 = vld [vmem:[#allocation9 + $0x30] sm:$0xf]
    %v343 = vld [vmem:[#allocation9 + $0x34] sm:$0xf]
    %v344 = vld [vmem:[#allocation9 + $0x38] sm:$0xf]
    %v345 = vld [vmem:[#allocation9 + $0x3c] sm:$0xf]
    %v346 = vld [vmem:[%s7] sm:$0x1]
    %v348 = vperm.slane %v346, 0
    %v366 = vunpack.c.l.b16 %v330
    %v367 = vunpack.c.l.b16 %v331
    %v368 = vunpack.c.l.b16 %v332
    %v369 = vunpack.c.l.b16 %v333
    %v370 = vunpack.c.l.b16 %v334
    %v371 = vunpack.c.l.b16 %v335
    %v372 = vunpack.c.l.b16 %v336
    %v373 = vunpack.c.l.b16 %v337
    %v374 = vunpack.c.l.b16 %v338
    %v375 = vunpack.c.l.b16 %v339
    %v376 = vunpack.c.l.b16 %v340
    %v377 = vunpack.c.l.b16 %v341
    %v378 = vunpack.c.l.b16 %v342
    %v379 = vunpack.c.l.b16 %v343
    %v380 = vunpack.c.l.b16 %v344
    %v381 = vunpack.c.l.b16 %v345
    %v382 = vpack.c.b16 %v367, %v366
    %v383 = vpack.c.b16 %v369, %v368
    %v384 = vpack.c.b16 %v371, %v370
    %v385 = vpack.c.b16 %v373, %v372
    %v386 = vpack.c.b16 %v375, %v374
    %v387 = vpack.c.b16 %v377, %v376
    %v388 = vpack.c.b16 %v379, %v378
    %v389 = vpack.c.b16 %v381, %v380
    %398 = vmatpush.bf16.msra.mxu0 %v389
    %399 = vmatpush.bf16.msra.mxu0 %v388
    %400 = vmatpush.bf16.msra.mxu0 %v387
    %401 = vmatpush.bf16.msra.mxu0 %v386
    %402 = vmatpush.bf16.msra.mxu0 %v385
    %403 = vmatpush.bf16.msra.mxu0 %v384
    %404 = vmatpush.bf16.msra.mxu0 %v383
    %405 = vmatpush.bf16.msra.mxu0 %v382
    %406 = vmatmul.bf16.gmra.mxu0 %v134
    %v407 = vpop.f32.mrf.mxu0
    %v408 = vadd.f32 %v348, %v407
    %v409 = vpop.f32.mrf.mxu0
    %v410 = vadd.f32 %v348, %v409
    %411 = vmatmul.bf16.gmra.mxu0 %v135
    %v412 = vpop.f32.mrf.mxu0
    %v413 = vadd.f32 %v348, %v412
    %v414 = vpop.f32.mrf.mxu0
    %v415 = vadd.f32 %v348, %v414
    %416 = vdwg.mxu0
    %v417 = vpack.c.bf16 %v408, %v408
    %v418 = vpack.c.bf16 %v410, %v410
    %v419 = vpack.c.bf16 %v413, %v413
    %v420 = vpack.c.bf16 %v415, %v415
    %421 = vst [vmem:[%s10] sm:$0xf] %v417
    %422 = vst [vmem:[%s10 + $0x4] sm:$0xf] %v418
    %423 = vst [vmem:[%s10 + $0x8] sm:$0xf] %v419
    %424 = vst [vmem:[%s10 + $0xc] sm:$0xf] %v420
    // Predicated region
    $region58: #{cross_attention_forward.2} parent=1 // pred_check
      _
    $region59: #{cross_attention_forward.2} parent=1 // pred_check_branch
      %426 = sbr.rel (0) target = $region61
    $region60: #{cross_attention_forward.2} parent=1 // pred_region
      _
    $region61: #{cross_attention_forward.2} parent=1 // pred_fallthru
      _
    // Predicated region
    $region62: #{cross_attention_forward.2} parent=1 // pred_check
      _
    $region63: #{cross_attention_forward.2} parent=1 // pred_check_branch
      %428 = sbr.rel (0) target = $region65
    $region64: #{cross_attention_forward.2} parent=1 // pred_region
      _
    $region65: #{cross_attention_forward.2} parent=1 // pred_fallthru
      _
    // Predicated region
    $region66: #{cross_attention_forward.2} parent=1 // pred_check
      _
    $region67: #{cross_attention_forward.2} parent=1 // pred_check_branch
      %430 = sbr.rel (0) target = $region69
    $region68: #{cross_attention_forward.2} parent=1 // pred_region
      _
    $region69: #{cross_attention_forward.2} parent=1 // pred_fallthru
      _
    // Predicated region
    $region70: #{cross_attention_forward.2} parent=1 // pred_check
      _
    $region71: #{cross_attention_forward.2} parent=1 // pred_check_branch
      %432 = sbr.rel (0) target = $region73
    $region72: #{cross_attention_forward.2} parent=1 // pred_region
      _
    $region73: #{cross_attention_forward.2} parent=1 // pred_fallthru
      _
    // Predicated region
    $region74: #{cross_attention_forward.2} parent=1 // pred_check
      _
    $region75: #{cross_attention_forward.2} parent=1 // pred_check_branch
      %434 = sbr.rel (0) target = $region77
    $region76: #{cross_attention_forward.2} parent=1 // pred_region
      _
    $region77: #{cross_attention_forward.2} parent=1 // pred_fallthru
      _
    // Predicated region
    $region78: #{cross_attention_forward.2} parent=1 // pred_check
      _
    $region79: #{cross_attention_forward.2} parent=1 // pred_check_branch
      %436 = sbr.rel (0) target = $region81
    $region80: #{cross_attention_forward.2} parent=1 // pred_region
      _
    $region81: #{cross_attention_forward.2} parent=1 // pred_fallthru
      _
    %437 = vsyncpa [#allocation3], 1
    %438 = vsyncpa [#allocation5], 1
    %439 = vsyncpa [#allocation8], 1
    %440 = vsyncpa [#allocation11], 1

// kernel: cross_attention_forward.3
$region0: #{cross_attention_forward.3}
  #allocation0 [shape = 'u32[]', space=smem, size = 0x4, offset = 0x4, fixed_abs, tag = 'smem constant byte address 0x4 - core index']
  #allocation1 [shape = 'u32[72,128]{1,0:T(1,128)}', space=vmem, size = 0x9000, scoped, tag = 'internal scratch']
  %s0 = inlined_call_operand.vmem [shape: bf16[2,16,128], index: 0, kind: input, shape index: {}]
  %s1 = inlined_call_operand.vmem [shape: bf16[2,16,128], index: 1, kind: input, shape index: {}]
  %s2 = inlined_call_operand.vmem [shape: bf16[2,16,128], index: 2, kind: input, shape index: {}]
  %s3 = inlined_call_operand.hbm [shape: bf16[128,128], index: 3, kind: input, shape index: {}]
  %s4 = inlined_call_operand.vmem [shape: f32[1,128], index: 4, kind: input, shape index: {}]
  %s5 = inlined_call_operand.hbm [shape: f32[2,16,128], index: 5, kind: output, shape index: {}]
  %s6 = sld [smem:[#allocation0]]
  $region57: #{cross_attention_forward.3} parent=0
    _
  %s8 = ssub.s32 1, %s6
  %s9 = scalar_select 0, %s8, %s6
  $region1: #{cross_attention_forward.3} parent=0
    #allocation2 [shape = 'u8[32768]{0}', space=vmem, size = 0x8000, scoped, tag = 'input window, operand 3, single buffered']
    #allocation3 [shape = 's32[2]{0}', space=sflag, size = 0x8, scoped, tag = 'scoped memory for cross_attention_forward.3']
    #allocation4 [shape = 's32[2]{0}', space=sflag, size = 0x8, scoped, tag = 'scoped memory for cross_attention_forward.3']
    #allocation5 [shape = 'u8[16384]{0}', space=vmem, size = 0x4000, scoped, tag = 'output window, operand 0']
    %10 = vsyncpa [#allocation3], 0
    %11 = vsyncpa [#allocation4], 0
    %s12 = scalar_lea.sflag [#allocation4], 1
    %13 = vsyncpa %s12, 0
    loop: start=0, step=1, limit=4
    $region2: #{cross_attention_forward.3} parent=1 // loop_pre_header
      _
    $region3: #{cross_attention_forward.3} parent=1 // loop_header
      %s15 = sphi 0, %s19
      %p16 = scmp.ge.s32.totalorder %s15, 4
      %s22 = sphi 0, %s34
      %s23 = sphi 0, %s30
      %s24 = sphi 0, %s22
      %s25 = sphi 0, %s23
      %s26 = sphi 0, %s24
      %s27 = sphi 0, %s25
      %s39 = sphi 0, %s41
      %s42 = sphi 0, %s39
      %s43 = sphi 0, %s42
      %s59 = sphi 0, %s43
      %s65 = sphi 0, %s67
      %s68 = sphi 0, %s65
      %s69 = sphi 0, %s68
      %s85 = sphi 0, %s69
      %s91 = sphi 0, %s93
      %s94 = sphi 0, %s91
      %s95 = sphi 0, %s94
      %s111 = sphi 0, %s95
      %s115 = sphi 0, %s115
      %s117 = sphi 0, %s115
      %s118 = sphi 0, %s117
      %s132 = sphi 0, %s118
      %s136 = sphi 0, %s136
      %s138 = sphi 0, %s136
      %s139 = sphi 0, %s138
      %s153 = sphi 0, %s139
      %s161 = sphi 0, %s163
      %s164 = sphi 0, %s161
      %s165 = sphi 0, %s164
      %s181 = sphi 0, %s165
    $region4: #{cross_attention_forward.3} parent=1 // loop_header_branch
      %18 = sbr.rel (%p16) target = $region8
    $region5: #{cross_attention_forward.3} parent=1 // loop_body
      %s20 = ssub.s32 %s15, 1
      %s21 = ssub.s32 %s15, 2
      %s28 = sadd.s32 1, %s23
      %p29 = scmp.ge.s32.totalorder %s28, 1
      %s30 = scalar_select %p29, 0, %s28
      %s31 = sadd.s32 1, %s22
      %s32 = scalar_select %p29, %s31, %s22
      %p33 = scmp.ge.s32.totalorder %s32, 2
      %s34 = scalar_select %p33, 0, %s32
      %s35 = ssub.s32 %s22, %s34
      %s36 = ssub.s32 %s23, %s30
      %s37 = sor.u32 %s35, %s36
      %p38 = scmp.eq.s32.totalorder %s37, 0
      %s40 = sadd.s32 %s39, 1
      %s41 = scalar_select %p38, %s39, %s40
      %p44 = pneg %p38
      %p45 = scmp.eq.s32.totalorder %s15, 1
      %p46 = por %p44, %p45
      %p47 = scmp.ne.s32.totalorder %s39, %s42
      %p48 = scmp.eq.s32.totalorder %s15, 0
      %p49 = por %p47, %p48
      %p50 = scmp.ne.s32.totalorder %s39, %s42
      %p51 = scmp.eq.s32.totalorder %s20, 1
      %p52 = por %p50, %p51
      %p53 = scmp.ne.s32.totalorder %s42, %s43
      %p54 = scmp.eq.s32.totalorder %s20, 0
      %p55 = por %p53, %p54
      %p56 = scmp.ne.s32.totalorder %s42, %s43
      %p57 = scmp.eq.s32.totalorder %s21, 1
      %p58 = por %p56, %p57
      %p60 = scmp.ne.s32.totalorder %s43, %s59
      %p61 = scmp.eq.s32.totalorder %s21, 0
      %p62 = por %p60, %p61
      %s63 = ssub.s32 %s22, %s34
      %p64 = scmp.eq.s32.totalorder %s63, 0
      %s66 = sadd.s32 %s65, 1
      %s67 = scalar_select %p64, %s65, %s66
      %p70 = pneg %p64
      %p71 = scmp.eq.s32.totalorder %s15, 1
      %p72 = por %p70, %p71
      %p73 = scmp.ne.s32.totalorder %s65, %s68
      %p74 = scmp.eq.s32.totalorder %s15, 0
      %p75 = por %p73, %p74
      %p76 = scmp.ne.s32.totalorder %s65, %s68
      %p77 = scmp.eq.s32.totalorder %s20, 1
      %p78 = por %p76, %p77
      %p79 = scmp.ne.s32.totalorder %s68, %s69
      %p80 = scmp.eq.s32.totalorder %s20, 0
      %p81 = por %p79, %p80
      %p82 = scmp.ne.s32.totalorder %s68, %s69
      %p83 = scmp.eq.s32.totalorder %s21, 1
      %p84 = por %p82, %p83
      %p86 = scmp.ne.s32.totalorder %s69, %s85
      %p87 = scmp.eq.s32.totalorder %s21, 0
      %p88 = por %p86, %p87
      %s89 = ssub.s32 %s22, %s34
      %p90 = scmp.eq.s32.totalorder %s89, 0
      %s92 = sadd.s32 %s91, 1
      %s93 = scalar_select %p90, %s91, %s92
      %p96 = pneg %p90
      %p97 = scmp.eq.s32.totalorder %s15, 1
      %p98 = por %p96, %p97
      %p99 = scmp.ne.s32.totalorder %s91, %s94
      %p100 = scmp.eq.s32.totalorder %s15, 0
      %p101 = por %p99, %p100
      %p102 = scmp.ne.s32.totalorder %s91, %s94
      %p103 = scmp.eq.s32.totalorder %s20, 1
      %p104 = por %p102, %p103
      %p105 = scmp.ne.s32.totalorder %s94, %s95
      %p106 = scmp.eq.s32.totalorder %s20, 0
      %p107 = por %p105, %p106
      %p108 = scmp.ne.s32.totalorder %s94, %s95
      %p109 = scmp.eq.s32.totalorder %s21, 1
      %p110 = por %p108, %p109
      %p112 = scmp.ne.s32.totalorder %s95, %s111
      %p113 = scmp.eq.s32.totalorder %s21, 0
      %p114 = por %p112, %p113
      %s116 = sadd.s32 %s115, 1
      %p119 = scmp.eq.s32.totalorder %s15, 1
      %p120 = scmp.ne.s32.totalorder %s115, %s117
      %p121 = scmp.eq.s32.totalorder %s15, 0
      %p122 = por %p120, %p121
      %p123 = scmp.ne.s32.totalorder %s115, %s117
      %p124 = scmp.eq.s32.totalorder %s20, 1
      %p125 = por %p123, %p124
      %p126 = scmp.ne.s32.totalorder %s117, %s118
      %p127 = scmp.eq.s32.totalorder %s20, 0
      %p128 = por %p126, %p127
      %p129 = scmp.ne.s32.totalorder %s117, %s118
      %p130 = scmp.eq.s32.totalorder %s21, 1
      %p131 = por %p129, %p130
      %p133 = scmp.ne.s32.totalorder %s118, %s132
      %p134 = scmp.eq.s32.totalorder %s21, 0
      %p135 = por %p133, %p134
      %s137 = sadd.s32 %s136, 1
      %p140 = scmp.eq.s32.totalorder %s15, 1
      %p141 = scmp.ne.s32.totalorder %s136, %s138
      %p142 = scmp.eq.s32.totalorder %s15, 0
      %p143 = por %p141, %p142
      %p144 = scmp.ne.s32.totalorder %s136, %s138
      %p145 = scmp.eq.s32.totalorder %s20, 1
      %p146 = por %p144, %p145
      %p147 = scmp.ne.s32.totalorder %s138, %s139
      %p148 = scmp.eq.s32.totalorder %s20, 0
      %p149 = por %p147, %p148
      %p150 = scmp.ne.s32.totalorder %s138, %s139
      %p151 = scmp.eq.s32.totalorder %s21, 1
      %p152 = por %p150, %p151
      %p154 = scmp.ne.s32.totalorder %s139, %s153
      %p155 = scmp.eq.s32.totalorder %s21, 0
      %p156 = por %p154, %p155
      %s157 = ssub.s32 %s22, %s34
      %s158 = ssub.s32 %s23, %s30
      %s159 = sor.u32 %s157, %s158
      %p160 = scmp.eq.s32.totalorder %s159, 0
      %s162 = sadd.s32 %s161, 1
      %s163 = scalar_select %p160, %s161, %s162
      %p166 = pneg %p160
      %p167 = scmp.eq.s32.totalorder %s15, 1
      %p168 = por %p166, %p167
      %p169 = scmp.ne.s32.totalorder %s161, %s164
      %p170 = scmp.eq.s32.totalorder %s15, 0
      %p171 = por %p169, %p170
      %p172 = scmp.ne.s32.totalorder %s161, %s164
      %p173 = scmp.eq.s32.totalorder %s20, 1
      %p174 = por %p172, %p173
      %p175 = scmp.ne.s32.totalorder %s164, %s165
      %p176 = scmp.eq.s32.totalorder %s20, 0
      %p177 = por %p175, %p176
      %p178 = scmp.ne.s32.totalorder %s164, %s165
      %p179 = scmp.eq.s32.totalorder %s21, 1
      %p180 = por %p178, %p179
      %p182 = scmp.ne.s32.totalorder %s165, %s181
      %p183 = scmp.eq.s32.totalorder %s21, 0
      %p184 = por %p182, %p183
      %p185 = scmp.le.s32.totalorder 1, %s15
      %p186 = scmp.lt.s32.totalorder %s15, 3
      %p187 = pnand %p185, %p186
      %p188 = pneg %p187
      // Predicated region
      $region9: #{cross_attention_forward.3} parent=5 // pred_check
        _
      $region10: #{cross_attention_forward.3} parent=5 // pred_check_branch
        %190 = sbr.rel (%p187) target = $region12
      $region11: #{cross_attention_forward.3} parent=5 // pred_region
        %s191 = ssub.s32 %s15, 1
        // Predicated region
        $region13: #{cross_attention_forward.3} parent=11 // pred_check
          %p192 = pneg %p128
        $region14: #{cross_attention_forward.3} parent=11 // pred_check_branch
          %194 = sbr.rel (%p192) target = $region16
        $region15: #{cross_attention_forward.3} parent=11 // pred_region
          %196 = vsyncadd [#allocation3], 0
          %s197 = sshll.u32 %s3, 4
          %s198 = int_to_ptr.hbm [resolvable:$true] %s197
          %s199 = sshll.u32 [#allocation2], 4
          %s200 = int_to_ptr.vmem [resolvable:$true] %s199
          %205 = dma.hbm_to_vmem [thread:$0]  %s198, 1024, %s200, [#allocation3], 64, 64, 4
        $region16: #{cross_attention_forward.3} parent=11 // pred_fallthru
          _
        // Predicated region
        $region17: #{cross_attention_forward.3} parent=11 // pred_check
          %p206 = pneg %p149
        $region18: #{cross_attention_forward.3} parent=11 // pred_check_branch
          %208 = sbr.rel (%p206) target = $region20
        $region19: #{cross_attention_forward.3} parent=11 // pred_region
          _
        $region20: #{cross_attention_forward.3} parent=11 // pred_fallthru
          _
      $region12: #{cross_attention_forward.3} parent=5 // pred_fallthru
        _
      %p209 = scmp.lt.s32.totalorder %s15, 2
      // Predicated region
      $region21: #{cross_attention_forward.3} parent=5 // pred_check
        %p210 = pneg %p209
      $region22: #{cross_attention_forward.3} parent=5 // pred_check_branch
        %212 = sbr.rel (%p210) target = $region24
      $region23: #{cross_attention_forward.3} parent=5 // pred_region
        // Predicated region
        $region25: #{cross_attention_forward.3} parent=23 // pred_check
          %p213 = pneg %p49
        $region26: #{cross_attention_forward.3} parent=23 // pred_check_branch
          %215 = sbr.rel (%p213) target = $region28
        $region27: #{cross_attention_forward.3} parent=23 // pred_region
          %s216 = smul.u32 2, %s23
          %p217 = scmp.lt.s32.totalorder %s22, 1
          %s218 = scalar_select %p217, %s22, 1
          %p219 = scmp.lt.s32.totalorder %s216, 1
          %s220 = scalar_select %p219, %s216, 1
          %s221 = smul.addr %s218, 2
          %s222 = sadd.s32 %s220, %s221
          %s223 = smul.addr %s222, 4
          %s224 = scalar_lea.vmem %s0, %s223
          %s225 = smul.u32 2, %s23
        $region28: #{cross_attention_forward.3} parent=23 // pred_fallthru
          _
        // Predicated region
        $region29: #{cross_attention_forward.3} parent=23 // pred_check
          %p226 = pneg %p75
        $region30: #{cross_attention_forward.3} parent=23 // pred_check_branch
          %228 = sbr.rel (%p226) target = $region32
        $region31: #{cross_attention_forward.3} parent=23 // pred_region
          %p229 = scmp.lt.s32.totalorder %s22, 1
          %s230 = scalar_select %p229, %s22, 1
          %s231 = smul.addr %s230, 2
          %s232 = smul.addr %s231, 4
          %s233 = scalar_lea.vmem %s1, %s232
        $region32: #{cross_attention_forward.3} parent=23 // pred_fallthru
          _
        // Predicated region
        $region33: #{cross_attention_forward.3} parent=23 // pred_check
          %p234 = pneg %p101
        $region34: #{cross_attention_forward.3} parent=23 // pred_check_branch
          %236 = sbr.rel (%p234) target = $region36
        $region35: #{cross_attention_forward.3} parent=23 // pred_region
          %p237 = scmp.lt.s32.totalorder %s22, 1
          %s238 = scalar_select %p237, %s22, 1
          %s239 = smul.addr %s238, 2
          %s240 = smul.addr %s239, 4
          %s241 = scalar_lea.vmem %s2, %s240
        $region36: #{cross_attention_forward.3} parent=23 // pred_fallthru
          _
      $region24: #{cross_attention_forward.3} parent=5 // pred_fallthru
        _
      %p242 = scmp.le.s32.totalorder 1, %s15
      %p243 = scmp.lt.s32.totalorder %s15, 3
      %p244 = pnand %p242, %p243
      %p245 = pneg %p244
      // Predicated region
      $region37: #{cross_attention_forward.3} parent=5 // pred_check
        _
      $region38: #{cross_attention_forward.3} parent=5 // pred_check_branch
        %247 = sbr.rel (%p244) target = $region40
      $region39: #{cross_attention_forward.3} parent=5 // pred_region
        %s248 = ssub.s32 %s15, 1
        // Predicated region
        $region41: #{cross_attention_forward.3} parent=39 // pred_check
          %p249 = pneg %p128
        $region42: #{cross_attention_forward.3} parent=39 // pred_check_branch
          %251 = sbr.rel (%p249) target = $region44
        $region43: #{cross_attention_forward.3} parent=39 // pred_region
          %253 = dma.done [#allocation3], 1024
        $region44: #{cross_attention_forward.3} parent=39 // pred_fallthru
          _
        %s254 = smul.u32 2, %s25
        %p255 = scmp.lt.s32.totalorder %s24, 1
        %s256 = scalar_select %p255, %s24, 1
        %p257 = scmp.lt.s32.totalorder %s254, 1
        %s258 = scalar_select %p257, %s254, 1
        %s259 = smul.addr %s256, 2
        %s260 = sadd.s32 %s258, %s259
        %s261 = smul.addr %s260, 4
        %s262 = scalar_lea.vmem %s0, %s261
        %p263 = pneg %p55
        %p264 = pneg %p52
        %p265 = scmp.lt.s32.totalorder %s24, 1
        %s266 = scalar_select %p265, %s24, 1
        %s267 = smul.addr %s266, 2
        %s268 = smul.addr %s267, 4
        %s269 = scalar_lea.vmem %s1, %s268
        %p270 = pneg %p81
        %p271 = pneg %p78
        %p272 = scmp.lt.s32.totalorder %s24, 1
        %s273 = scalar_select %p272, %s24, 1
        %s274 = smul.addr %s273, 2
        %s275 = smul.addr %s274, 4
        %s276 = scalar_lea.vmem %s2, %s275
        %p277 = pneg %p107
        %p278 = pneg %p104
        %p279 = pneg %p128
        %p280 = pneg %p125
        %p281 = pneg %p149
        %p282 = pneg %p146
        %p283 = pneg %p177
        %p284 = pneg %p174
        %s285 = sand.u32 %s164, 1
        %s286 = scalar_lea.sflag [#allocation4], %s285
        %s287 = sand.u32 %s164, 1
        %s288 = smul.addr %s287, 16
        %s289 = scalar_lea.vmem [#allocation5], %s288
        %s290 = smul.u32 2, %s25
        %p291 = scmp.lt.s32.totalorder %s24, 1
        %s292 = scalar_select %p291, %s24, 1
        %p293 = scmp.lt.s32.totalorder %s290, 1
        %s294 = scalar_select %p293, %s290, 1
        %s295 = smul.addr %s292, 2
        %s296 = sadd.s32 %s294, %s295
        %s297 = smul.addr %s296, 4
        %s298 = scalar_lea.vmem %s0, %s297
        %s299 = smul.u32 2, %s25
        %p300 = scmp.lt.s32.totalorder %s24, 1
        %s301 = scalar_select %p300, %s24, 1
        %s302 = smul.addr %s301, 2
        %s303 = smul.addr %s302, 4
        %s304 = scalar_lea.vmem %s1, %s303
        %p305 = scmp.lt.s32.totalorder %s24, 1
        %s306 = scalar_select %p305, %s24, 1
        %s307 = smul.addr %s306, 2
        %s308 = smul.addr %s307, 4
        %s309 = scalar_lea.vmem %s2, %s308
        %s310 = smul.u32 2, %s25
        %v312 = vld [vmem:[%s298] sm:$0xf]
        %v313 = vld [vmem:[%s298 + $0x4] sm:$0xf]
        %v314 = vld [vmem:[%s304] sm:$0xf]
        %v315 = vld [vmem:[%s304 + $0x4] sm:$0xf]
        %v316 = vld [vmem:[%s309] sm:$0xf]
        %v317 = vld [vmem:[%s309 + $0x4] sm:$0xf]
        %v318 = vld [vmem:[#allocation2] sm:$0xf]
        %v319 = vld [vmem:[#allocation2 + $0x4] sm:$0xf]
        %v320 = vld [vmem:[#allocation2 + $0x8] sm:$0xf]
        %v321 = vld [vmem:[#allocation2 + $0xc] sm:$0xf]
        %v322 = vld [vmem:[#allocation2 + $0x10] sm:$0xf]
        %v323 = vld [vmem:[#allocation2 + $0x14] sm:$0xf]
        %v324 = vld [vmem:[#allocation2 + $0x18] sm:$0xf]
        %v325 = vld [vmem:[#allocation2 + $0x1c] sm:$0xf]
        %v326 = vld [vmem:[#allocation2 + $0x20] sm:$0xf]
        %v327 = vld [vmem:[#allocation2 + $0x24] sm:$0xf]
        %v328 = vld [vmem:[#allocation2 + $0x28] sm:$0xf]
        %v329 = vld [vmem:[#allocation2 + $0x2c] sm:$0xf]
        %v330 = vld [vmem:[#allocation2 + $0x30] sm:$0xf]
        %v331 = vld [vmem:[#allocation2 + $0x34] sm:$0xf]
        %v332 = vld [vmem:[#allocation2 + $0x38] sm:$0xf]
        %v333 = vld [vmem:[#allocation2 + $0x3c] sm:$0xf]
        %v336 = vunpack.c.l.b16 %v312
        %v337 = vunpack.c.l.b16 %v313
        %v338 = vpack.c.b16 %v337, %v336
        %v341 = vunpack.c.l.b16 %v314
        %v342 = vunpack.c.l.b16 %v315
        %v343 = vpack.c.b16 %v342, %v341
        %vm344 = vcmask 130048
        %v346 = vsel %vm344, %v338, 0
        %v349 = vsel %vm344, %v343, 0
        %351 = vmatpush.bf16.xpose.msra.mxu0 0
        %352 = vmatpush.bf16.xpose.msra.mxu0 0
        %353 = vmatpush.bf16.xpose.msra.mxu0 0
        %354 = vmatpush.bf16.xpose.msra.mxu0 0
        %355 = vmatpush.bf16.xpose.msra.mxu0 0
        %356 = vmatpush.bf16.xpose.msra.mxu0 0
        %357 = vmatpush.bf16.xpose.msra.mxu0 0
        %358 = vmatpush.bf16.xpose.msra.mxu0 %v349
        %359 = vmatmul.bf16.gmra.mxu0 %v346
        %v360 = vpop.f32.mrf.mxu0
        %v361 = vadd.f32 0.0, %v360
        %v362 = vpop.f32.mrf.mxu0
        %v363 = vadd.f32 0.0, %v362
        %364 = vdwg.mxu0
        %v365 = vsel %vm344, %v361, -inf
        %366 = vmax.xlane.f32.xlu0 %v365
        %v367 = vpop.xlane.xlu0 %366
        %v368 = vsel %vm344, %v363, -inf
        %369 = vmax.xlane.f32.xlu0 %v368
        %v370 = vpop.xlane.xlu0 %369
        %v371 = vsub.f32 %v361, %v367
        %v372 = vsub.f32 %v363, %v370
        %v373 = vmul.f32 %v371, 1.442695
        %v374 = vpow.pop %v373
        %v375 = vmul.f32 %v372, 1.442695
        %v376 = vpow.pop %v375
        %v377 = vsel %vm344, %v374, 0.0
        %378 = vadd.xlane.f32.xlu0 %v377
        %v379 = vpop.xlane.xlu0 %378
        %v380 = vsel %vm344, %v376, 0.0
        %381 = vadd.xlane.f32.xlu0 %v380
        %v382 = vpop.xlane.xlu0 %381
        %v383 = vrcp.pop %v379
        %v384 = vrcp.pop %v382
        %v385 = vmul.f32 %v374, %v383
        %v386 = vmul.f32 %v376, %v384
        %v387 = vpack.c.bf16 %v386, %v385
        %v390 = vunpack.c.l.b16 %v316
        %v391 = vunpack.c.l.b16 %v317
        %v392 = vpack.c.b16 %v391, %v390
        %v395 = vsel %vm344, %v387, 0
        %397 = vmatpush.bf16.msra.mxu0 0
        %398 = vmatpush.bf16.msra.mxu0 0
        %399 = vmatpush.bf16.msra.mxu0 0
        %400 = vmatpush.bf16.msra.mxu0 0
        %401 = vmatpush.bf16.msra.mxu0 0
        %402 = vmatpush.bf16.msra.mxu0 0
        %403 = vmatpush.bf16.msra.mxu0 0
        %404 = vmatpush.bf16.msra.mxu0 %v392
        %405 = vmatmul.bf16.gmra.mxu0 %v395
        %v406 = vpop.f32.mrf.mxu0
        %v407 = vadd.f32 0.0, %v406
        %v408 = vpop.f32.mrf.mxu0
        %v409 = vadd.f32 0.0, %v408
        %410 = vdwg.mxu0
        %v411 = vpack.c.bf16 %v409, %v407
        %412 = vrot.lane.b32.xlu0 %v338, 112
        %v413 = vpop.permute.xlu0 %412
        %414 = vrot.lane.b32.xlu0 %v343, 112
        %v415 = vpop.permute.xlu0 %414
        %v417 = vsel %vm344, %v413, 0
        %v420 = vsel %vm344, %v415, 0
        %422 = vmatpush.bf16.xpose.msra.mxu0 0
        %423 = vmatpush.bf16.xpose.msra.mxu0 0
        %424 = vmatpush.bf16.xpose.msra.mxu0 0
        %425 = vmatpush.bf16.xpose.msra.mxu0 0
        %426 = vmatpush.bf16.xpose.msra.mxu0 0
        %427 = vmatpush.bf16.xpose.msra.mxu0 0
        %428 = vmatpush.bf16.xpose.msra.mxu0 0
        %429 = vmatpush.bf16.xpose.msra.mxu0 %v420
        %430 = vmatmul.bf16.gmra.mxu0 %v417
        %v431 = vpop.f32.mrf.mxu0
        %v432 = vadd.f32 0.0, %v431
        %v433 = vpop.f32.mrf.mxu0
        %v434 = vadd.f32 0.0, %v433
        %435 = vdwg.mxu0
        %v436 = vsel %vm344, %v432, -inf
        %437 = vmax.xlane.f32.xlu0 %v436
        %v438 = vpop.xlane.xlu0 %437
        %v439 = vsel %vm344, %v434, -inf
        %440 = vmax.xlane.f32.xlu0 %v439
        %v441 = vpop.xlane.xlu0 %440
        %v442 = vsub.f32 %v432, %v438
        %v443 = vsub.f32 %v434, %v441
        %v444 = vmul.f32 %v442, 1.442695
        %v445 = vpow.pop %v444
        %v446 = vmul.f32 %v443, 1.442695
        %v447 = vpow.pop %v446
        %v448 = vsel %vm344, %v445, 0.0
        %449 = vadd.xlane.f32.xlu0 %v448
        %v450 = vpop.xlane.xlu0 %449
        %v451 = vsel %vm344, %v447, 0.0
        %452 = vadd.xlane.f32.xlu0 %v451
        %v453 = vpop.xlane.xlu0 %452
        %v454 = vrcp.pop %v450
        %v455 = vrcp.pop %v453
        %v456 = vmul.f32 %v445, %v454
        %v457 = vmul.f32 %v447, %v455
        %v458 = vpack.c.bf16 %v457, %v456
        %459 = vrot.lane.b32.xlu0 %v392, 112
        %v460 = vpop.permute.xlu0 %459
        %v463 = vsel %vm344, %v458, 0
        %465 = vmatpush.bf16.msra.mxu0 0
        %466 = vmatpush.bf16.msra.mxu0 0
        %467 = vmatpush.bf16.msra.mxu0 0
        %468 = vmatpush.bf16.msra.mxu0 0
        %469 = vmatpush.bf16.msra.mxu0 0
        %470 = vmatpush.bf16.msra.mxu0 0
        %471 = vmatpush.bf16.msra.mxu0 0
        %472 = vmatpush.bf16.msra.mxu0 %v460
        %473 = vmatmul.bf16.gmra.mxu0 %v463
        %v474 = vpop.f32.mrf.mxu0
        %v475 = vadd.f32 0.0, %v474
        %v476 = vpop.f32.mrf.mxu0
        %v477 = vadd.f32 0.0, %v476
        %478 = vdwg.mxu0
        %v479 = vpack.c.bf16 %v477, %v475
        %v482 = vunpack.c.l.b16 %v320
        %v483 = vunpack.c.l.b16 %v321
        %v484 = vpack.c.b16 %v483, %v482
        %v487 = vsel %vm344, %v479, 0
        %489 = vmatpush.bf16.msra.mxu0 0
        %490 = vmatpush.bf16.msra.mxu0 0
        %491 = vmatpush.bf16.msra.mxu0 0
        %492 = vmatpush.bf16.msra.mxu0 0
        %493 = vmatpush.bf16.msra.mxu0 0
        %494 = vmatpush.bf16.msra.mxu0 0
        %495 = vmatpush.bf16.msra.mxu0 0
        %496 = vmatpush.bf16.msra.mxu0 %v484
        %497 = vmatmul.bf16.gmra.mxu0 %v487
        %v498 = vpop.f32.mrf.mxu0
        %v499 = vadd.f32 0.0, %v498
        %v500 = vpop.f32.mrf.mxu0
        %v501 = vadd.f32 0.0, %v500
        %502 = vdwg.mxu0
        %v505 = vunpack.c.l.b16 %v318
        %v506 = vunpack.c.l.b16 %v319
        %v507 = vpack.c.b16 %v506, %v505
        %v510 = vsel %vm344, %v411, 0
        %512 = vmatpush.bf16.msra.mxu0 0
        %513 = vmatpush.bf16.msra.mxu0 0
        %514 = vmatpush.bf16.msra.mxu0 0
        %515 = vmatpush.bf16.msra.mxu0 0
        %516 = vmatpush.bf16.msra.mxu0 0
        %517 = vmatpush.bf16.msra.mxu0 0
        %518 = vmatpush.bf16.msra.mxu0 0
        %519 = vmatpush.bf16.msra.mxu0 %v507
        %520 = vmatmul.bf16.gmra.mxu0 %v510
        %v521 = vpop.f32.mrf.mxu0
        %v522 = vadd.f32 %v499, %v521
        %v523 = vpop.f32.mrf.mxu0
        %v524 = vadd.f32 %v501, %v523
        %525 = vdwg.mxu0
        %526 = vrot.lane.b32.xlu0 %v338, 96
        %v527 = vpop.permute.xlu0 %526
        %528 = vrot.lane.b32.xlu0 %v343, 96
        %v529 = vpop.permute.xlu0 %528
        %v531 = vsel %vm344, %v527, 0
        %v534 = vsel %vm344, %v529, 0
        %536 = vmatpush.bf16.xpose.msra.mxu0 0
        %537 = vmatpush.bf16.xpose.msra.mxu0 0
        %538 = vmatpush.bf16.xpose.msra.mxu0 0
        %539 = vmatpush.bf16.xpose.msra.mxu0 0
        %540 = vmatpush.bf16.xpose.msra.mxu0 0
        %541 = vmatpush.bf16.xpose.msra.mxu0 0
        %542 = vmatpush.bf16.xpose.msra.mxu0 0
        %543 = vmatpush.bf16.xpose.msra.mxu0 %v534
        %544 = vmatmul.bf16.gmra.mxu0 %v531
        %v545 = vpop.f32.mrf.mxu0
        %v546 = vadd.f32 0.0, %v545
        %v547 = vpop.f32.mrf.mxu0
        %v548 = vadd.f32 0.0, %v547
        %549 = vdwg.mxu0
        %v550 = vsel %vm344, %v546, -inf
        %551 = vmax.xlane.f32.xlu0 %v550
        %v552 = vpop.xlane.xlu0 %551
        %v553 = vsel %vm344, %v548, -inf
        %554 = vmax.xlane.f32.xlu0 %v553
        %v555 = vpop.xlane.xlu0 %554
        %v556 = vsub.f32 %v546, %v552
        %v557 = vsub.f32 %v548, %v555
        %v558 = vmul.f32 %v556, 1.442695
        %v559 = vpow.pop %v558
        %v560 = vmul.f32 %v557, 1.442695
        %v561 = vpow.pop %v560
        %v562 = vsel %vm344, %v559, 0.0
        %563 = vadd.xlane.f32.xlu0 %v562
        %v564 = vpop.xlane.xlu0 %563
        %v565 = vsel %vm344, %v561, 0.0
        %566 = vadd.xlane.f32.xlu0 %v565
        %v567 = vpop.xlane.xlu0 %566
        %v568 = vrcp.pop %v564
        %v569 = vrcp.pop %v567
        %v570 = vmul.f32 %v559, %v568
        %v571 = vmul.f32 %v561, %v569
        %v572 = vpack.c.bf16 %v571, %v570
        %573 = vrot.lane.b32.xlu0 %v392, 96
        %v574 = vpop.permute.xlu0 %573
        %v577 = vsel %vm344, %v572, 0
        %579 = vmatpush.bf16.msra.mxu0 0
        %580 = vmatpush.bf16.msra.mxu0 0
        %581 = vmatpush.bf16.msra.mxu0 0
        %582 = vmatpush.bf16.msra.mxu0 0
        %583 = vmatpush.bf16.msra.mxu0 0
        %584 = vmatpush.bf16.msra.mxu0 0
        %585 = vmatpush.bf16.msra.mxu0 0
        %586 = vmatpush.bf16.msra.mxu0 %v574
        %587 = vmatmul.bf16.gmra.mxu0 %v577
        %v588 = vpop.f32.mrf.mxu0
        %v589 = vadd.f32 0.0, %v588
        %v590 = vpop.f32.mrf.mxu0
        %v591 = vadd.f32 0.0, %v590
        %592 = vdwg.mxu0
        %v593 = vpack.c.bf16 %v591, %v589
        %v596 = vunpack.c.l.b16 %v322
        %v597 = vunpack.c.l.b16 %v323
        %v598 = vpack.c.b16 %v597, %v596
        %v601 = vsel %vm344, %v593, 0
        %603 = vmatpush.bf16.msra.mxu0 0
        %604 = vmatpush.bf16.msra.mxu0 0
        %605 = vmatpush.bf16.msra.mxu0 0
        %606 = vmatpush.bf16.msra.mxu0 0
        %607 = vmatpush.bf16.msra.mxu0 0
        %608 = vmatpush.bf16.msra.mxu0 0
        %609 = vmatpush.bf16.msra.mxu0 0
        %610 = vmatpush.bf16.msra.mxu0 %v598
        %611 = vmatmul.bf16.gmra.mxu0 %v601
        %v612 = vpop.f32.mrf.mxu0
        %v613 = vadd.f32 0.0, %v612
        %v614 = vpop.f32.mrf.mxu0
        %v615 = vadd.f32 0.0, %v614
        %616 = vdwg.mxu0
        %v617 = vadd.f32 %v522, %v613
        %v618 = vadd.f32 %v524, %v615
        %619 = vrot.lane.b32.xlu0 %v338, 80
        %v620 = vpop.permute.xlu0 %619
        %621 = vrot.lane.b32.xlu0 %v343, 80
        %v622 = vpop.permute.xlu0 %621
        %v624 = vsel %vm344, %v620, 0
        %v627 = vsel %vm344, %v622, 0
        %629 = vmatpush.bf16.xpose.msra.mxu0 0
        %630 = vmatpush.bf16.xpose.msra.mxu0 0
        %631 = vmatpush.bf16.xpose.msra.mxu0 0
        %632 = vmatpush.bf16.xpose.msra.mxu0 0
        %633 = vmatpush.bf16.xpose.msra.mxu0 0
        %634 = vmatpush.bf16.xpose.msra.mxu0 0
        %635 = vmatpush.bf16.xpose.msra.mxu0 0
        %636 = vmatpush.bf16.xpose.msra.mxu0 %v627
        %637 = vmatmul.bf16.gmra.mxu0 %v624
        %v638 = vpop.f32.mrf.mxu0
        %v639 = vadd.f32 0.0, %v638
        %v640 = vpop.f32.mrf.mxu0
        %v641 = vadd.f32 0.0, %v640
        %642 = vdwg.mxu0
        %v643 = vsel %vm344, %v639, -inf
        %644 = vmax.xlane.f32.xlu0 %v643
        %v645 = vpop.xlane.xlu0 %644
        %v646 = vsel %vm344, %v641, -inf
        %647 = vmax.xlane.f32.xlu0 %v646
        %v648 = vpop.xlane.xlu0 %647
        %v649 = vsub.f32 %v639, %v645
        %v650 = vsub.f32 %v641, %v648
        %v651 = vmul.f32 %v649, 1.442695
        %v652 = vpow.pop %v651
        %v653 = vmul.f32 %v650, 1.442695
        %v654 = vpow.pop %v653
        %v655 = vsel %vm344, %v652, 0.0
        %656 = vadd.xlane.f32.xlu0 %v655
        %v657 = vpop.xlane.xlu0 %656
        %v658 = vsel %vm344, %v654, 0.0
        %659 = vadd.xlane.f32.xlu0 %v658
        %v660 = vpop.xlane.xlu0 %659
        %v661 = vrcp.pop %v657
        %v662 = vrcp.pop %v660
        %v663 = vmul.f32 %v652, %v661
        %v664 = vmul.f32 %v654, %v662
        %v665 = vpack.c.bf16 %v664, %v663
        %666 = vrot.lane.b32.xlu0 %v392, 80
        %v667 = vpop.permute.xlu0 %666
        %v670 = vsel %vm344, %v665, 0
        %672 = vmatpush.bf16.msra.mxu0 0
        %673 = vmatpush.bf16.msra.mxu0 0
        %674 = vmatpush.bf16.msra.mxu0 0
        %675 = vmatpush.bf16.msra.mxu0 0
        %676 = vmatpush.bf16.msra.mxu0 0
        %677 = vmatpush.bf16.msra.mxu0 0
        %678 = vmatpush.bf16.msra.mxu0 0
        %679 = vmatpush.bf16.msra.mxu0 %v667
        %680 = vmatmul.bf16.gmra.mxu0 %v670
        %v681 = vpop.f32.mrf.mxu0
        %v682 = vadd.f32 0.0, %v681
        %v683 = vpop.f32.mrf.mxu0
        %v684 = vadd.f32 0.0, %v683
        %685 = vdwg.mxu0
        %v686 = vpack.c.bf16 %v684, %v682
        %v689 = vunpack.c.l.b16 %v324
        %v690 = vunpack.c.l.b16 %v325
        %v691 = vpack.c.b16 %v690, %v689
        %v694 = vsel %vm344, %v686, 0
        %696 = vmatpush.bf16.msra.mxu0 0
        %697 = vmatpush.bf16.msra.mxu0 0
        %698 = vmatpush.bf16.msra.mxu0 0
        %699 = vmatpush.bf16.msra.mxu0 0
        %700 = vmatpush.bf16.msra.mxu0 0
        %701 = vmatpush.bf16.msra.mxu0 0
        %702 = vmatpush.bf16.msra.mxu0 0
        %703 = vmatpush.bf16.msra.mxu0 %v691
        %704 = vmatmul.bf16.gmra.mxu0 %v694
        %v705 = vpop.f32.mrf.mxu0
        %v706 = vadd.f32 0.0, %v705
        %v707 = vpop.f32.mrf.mxu0
        %v708 = vadd.f32 0.0, %v707
        %709 = vdwg.mxu0
        %v710 = vadd.f32 %v617, %v706
        %v711 = vadd.f32 %v618, %v708
        %712 = vrot.lane.b32.xlu0 %v338, 64
        %v713 = vpop.permute.xlu0 %712
        %714 = vrot.lane.b32.xlu0 %v343, 64
        %v715 = vpop.permute.xlu0 %714
        %v717 = vsel %vm344, %v713, 0
        %v720 = vsel %vm344, %v715, 0
        %722 = vmatpush.bf16.xpose.msra.mxu0 0
        %723 = vmatpush.bf16.xpose.msra.mxu0 0
        %724 = vmatpush.bf16.xpose.msra.mxu0 0
        %725 = vmatpush.bf16.xpose.msra.mxu0 0
        %726 = vmatpush.bf16.xpose.msra.mxu0 0
        %727 = vmatpush.bf16.xpose.msra.mxu0 0
        %728 = vmatpush.bf16.xpose.msra.mxu0 0
        %729 = vmatpush.bf16.xpose.msra.mxu0 %v720
        %730 = vmatmul.bf16.gmra.mxu0 %v717
        %v731 = vpop.f32.mrf.mxu0
        %v732 = vadd.f32 0.0, %v731
        %v733 = vpop.f32.mrf.mxu0
        %v734 = vadd.f32 0.0, %v733
        %735 = vdwg.mxu0
        %v736 = vsel %vm344, %v732, -inf
        %737 = vmax.xlane.f32.xlu0 %v736
        %v738 = vpop.xlane.xlu0 %737
        %v739 = vsel %vm344, %v734, -inf
        %740 = vmax.xlane.f32.xlu0 %v739
        %v741 = vpop.xlane.xlu0 %740
        %v742 = vsub.f32 %v732, %v738
        %v743 = vsub.f32 %v734, %v741
        %v744 = vmul.f32 %v742, 1.442695
        %v745 = vpow.pop %v744
        %v746 = vmul.f32 %v743, 1.442695
        %v747 = vpow.pop %v746
        %v748 = vsel %vm344, %v745, 0.0
        %749 = vadd.xlane.f32.xlu0 %v748
        %v750 = vpop.xlane.xlu0 %749
        %v751 = vsel %vm344, %v747, 0.0
        %752 = vadd.xlane.f32.xlu0 %v751
        %v753 = vpop.xlane.xlu0 %752
        %v754 = vrcp.pop %v750
        %v755 = vrcp.pop %v753
        %v756 = vmul.f32 %v745, %v754
        %v757 = vmul.f32 %v747, %v755
        %v758 = vpack.c.bf16 %v757, %v756
        %759 = vrot.lane.b32.xlu0 %v392, 64
        %v760 = vpop.permute.xlu0 %759
        %v763 = vsel %vm344, %v758, 0
        %765 = vmatpush.bf16.msra.mxu0 0
        %766 = vmatpush.bf16.msra.mxu0 0
        %767 = vmatpush.bf16.msra.mxu0 0
        %768 = vmatpush.bf16.msra.mxu0 0
        %769 = vmatpush.bf16.msra.mxu0 0
        %770 = vmatpush.bf16.msra.mxu0 0
        %771 = vmatpush.bf16.msra.mxu0 0
        %772 = vmatpush.bf16.msra.mxu0 %v760
        %773 = vmatmul.bf16.gmra.mxu0 %v763
        %v774 = vpop.f32.mrf.mxu0
        %v775 = vadd.f32 0.0, %v774
        %v776 = vpop.f32.mrf.mxu0
        %v777 = vadd.f32 0.0, %v776
        %778 = vdwg.mxu0
        %v779 = vpack.c.bf16 %v777, %v775
        %v782 = vunpack.c.l.b16 %v326
        %v783 = vunpack.c.l.b16 %v327
        %v784 = vpack.c.b16 %v783, %v782
        %v787 = vsel %vm344, %v779, 0
        %789 = vmatpush.bf16.msra.mxu0 0
        %790 = vmatpush.bf16.msra.mxu0 0
        %791 = vmatpush.bf16.msra.mxu0 0
        %792 = vmatpush.bf16.msra.mxu0 0
        %793 = vmatpush.bf16.msra.mxu0 0
        %794 = vmatpush.bf16.msra.mxu0 0
        %795 = vmatpush.bf16.msra.mxu0 0
        %796 = vmatpush.bf16.msra.mxu0 %v784
        %797 = vmatmul.bf16.gmra.mxu0 %v787
        %v798 = vpop.f32.mrf.mxu0
        %v799 = vadd.f32 0.0, %v798
        %v800 = vpop.f32.mrf.mxu0
        %v801 = vadd.f32 0.0, %v800
        %802 = vdwg.mxu0
        %v803 = vadd.f32 %v710, %v799
        %v804 = vadd.f32 %v711, %v801
        %805 = vrot.lane.b32.xlu0 %v338, 48
        %v806 = vpop.permute.xlu0 %805
        %807 = vrot.lane.b32.xlu0 %v343, 48
        %v808 = vpop.permute.xlu0 %807
        %v810 = vsel %vm344, %v806, 0
        %v813 = vsel %vm344, %v808, 0
        %815 = vmatpush.bf16.xpose.msra.mxu0 0
        %816 = vmatpush.bf16.xpose.msra.mxu0 0
        %817 = vmatpush.bf16.xpose.msra.mxu0 0
        %818 = vmatpush.bf16.xpose.msra.mxu0 0
        %819 = vmatpush.bf16.xpose.msra.mxu0 0
        %820 = vmatpush.bf16.xpose.msra.mxu0 0
        %821 = vmatpush.bf16.xpose.msra.mxu0 0
        %822 = vmatpush.bf16.xpose.msra.mxu0 %v813
        %823 = vmatmul.bf16.gmra.mxu0 %v810
        %v824 = vpop.f32.mrf.mxu0
        %v825 = vadd.f32 0.0, %v824
        %v826 = vpop.f32.mrf.mxu0
        %v827 = vadd.f32 0.0, %v826
        %828 = vdwg.mxu0
        %v829 = vsel %vm344, %v825, -inf
        %830 = vmax.xlane.f32.xlu0 %v829
        %v831 = vpop.xlane.xlu0 %830
        %v832 = vsel %vm344, %v827, -inf
        %833 = vmax.xlane.f32.xlu0 %v832
        %v834 = vpop.xlane.xlu0 %833
        %v835 = vsub.f32 %v825, %v831
        %v836 = vsub.f32 %v827, %v834
        %v837 = vmul.f32 %v835, 1.442695
        %v838 = vpow.pop %v837
        %v839 = vmul.f32 %v836, 1.442695
        %v840 = vpow.pop %v839
        %v841 = vsel %vm344, %v838, 0.0
        %842 = vadd.xlane.f32.xlu0 %v841
        %v843 = vpop.xlane.xlu0 %842
        %v844 = vsel %vm344, %v840, 0.0
        %845 = vadd.xlane.f32.xlu0 %v844
        %v846 = vpop.xlane.xlu0 %845
        %v847 = vrcp.pop %v843
        %v848 = vrcp.pop %v846
        %v849 = vmul.f32 %v838, %v847
        %v850 = vmul.f32 %v840, %v848
        %v851 = vpack.c.bf16 %v850, %v849
        %852 = vrot.lane.b32.xlu0 %v392, 48
        %v853 = vpop.permute.xlu0 %852
        %v856 = vsel %vm344, %v851, 0
        %858 = vmatpush.bf16.msra.mxu0 0
        %859 = vmatpush.bf16.msra.mxu0 0
        %860 = vmatpush.bf16.msra.mxu0 0
        %861 = vmatpush.bf16.msra.mxu0 0
        %862 = vmatpush.bf16.msra.mxu0 0
        %863 = vmatpush.bf16.msra.mxu0 0
        %864 = vmatpush.bf16.msra.mxu0 0
        %865 = vmatpush.bf16.msra.mxu0 %v853
        %866 = vmatmul.bf16.gmra.mxu0 %v856
        %v867 = vpop.f32.mrf.mxu0
        %v868 = vadd.f32 0.0, %v867
        %v869 = vpop.f32.mrf.mxu0
        %v870 = vadd.f32 0.0, %v869
        %871 = vdwg.mxu0
        %v872 = vpack.c.bf16 %v870, %v868
        %v875 = vunpack.c.l.b16 %v328
        %v876 = vunpack.c.l.b16 %v329
        %v877 = vpack.c.b16 %v876, %v875
        %v880 = vsel %vm344, %v872, 0
        %882 = vmatpush.bf16.msra.mxu0 0
        %883 = vmatpush.bf16.msra.mxu0 0
        %884 = vmatpush.bf16.msra.mxu0 0
        %885 = vmatpush.bf16.msra.mxu0 0
        %886 = vmatpush.bf16.msra.mxu0 0
        %887 = vmatpush.bf16.msra.mxu0 0
        %888 = vmatpush.bf16.msra.mxu0 0
        %889 = vmatpush.bf16.msra.mxu0 %v877
        %890 = vmatmul.bf16.gmra.mxu0 %v880
        %v891 = vpop.f32.mrf.mxu0
        %v892 = vadd.f32 0.0, %v891
        %v893 = vpop.f32.mrf.mxu0
        %v894 = vadd.f32 0.0, %v893
        %895 = vdwg.mxu0
        %v896 = vadd.f32 %v803, %v892
        %v897 = vadd.f32 %v804, %v894
        %898 = vrot.lane.b32.xlu0 %v338, 32
        %v899 = vpop.permute.xlu0 %898
        %900 = vrot.lane.b32.xlu0 %v343, 32
        %v901 = vpop.permute.xlu0 %900
        %v903 = vsel %vm344, %v899, 0
        %v906 = vsel %vm344, %v901, 0
        %908 = vmatpush.bf16.xpose.msra.mxu0 0
        %909 = vmatpush.bf16.xpose.msra.mxu0 0
        %910 = vmatpush.bf16.xpose.msra.mxu0 0
        %911 = vmatpush.bf16.xpose.msra.mxu0 0
        %912 = vmatpush.bf16.xpose.msra.mxu0 0
        %913 = vmatpush.bf16.xpose.msra.mxu0 0
        %914 = vmatpush.bf16.xpose.msra.mxu0 0
        %915 = vmatpush.bf16.xpose.msra.mxu0 %v906
        %916 = vmatmul.bf16.gmra.mxu0 %v903
        %v917 = vpop.f32.mrf.mxu0
        %v918 = vadd.f32 0.0, %v917
        %v919 = vpop.f32.mrf.mxu0
        %v920 = vadd.f32 0.0, %v919
        %921 = vdwg.mxu0
        %v922 = vsel %vm344, %v918, -inf
        %923 = vmax.xlane.f32.xlu0 %v922
        %v924 = vpop.xlane.xlu0 %923
        %v925 = vsel %vm344, %v920, -inf
        %926 = vmax.xlane.f32.xlu0 %v925
        %v927 = vpop.xlane.xlu0 %926
        %v928 = vsub.f32 %v918, %v924
        %v929 = vsub.f32 %v920, %v927
        %v930 = vmul.f32 %v928, 1.442695
        %v931 = vpow.pop %v930
        %v932 = vmul.f32 %v929, 1.442695
        %v933 = vpow.pop %v932
        %v934 = vsel %vm344, %v931, 0.0
        %935 = vadd.xlane.f32.xlu0 %v934
        %v936 = vpop.xlane.xlu0 %935
        %v937 = vsel %vm344, %v933, 0.0
        %938 = vadd.xlane.f32.xlu0 %v937
        %v939 = vpop.xlane.xlu0 %938
        %v940 = vrcp.pop %v936
        %v941 = vrcp.pop %v939
        %v942 = vmul.f32 %v931, %v940
        %v943 = vmul.f32 %v933, %v941
        %v944 = vpack.c.bf16 %v943, %v942
        %945 = vrot.lane.b32.xlu0 %v392, 32
        %v946 = vpop.permute.xlu0 %945
        %v949 = vsel %vm344, %v944, 0
        %951 = vmatpush.bf16.msra.mxu0 0
        %952 = vmatpush.bf16.msra.mxu0 0
        %953 = vmatpush.bf16.msra.mxu0 0
        %954 = vmatpush.bf16.msra.mxu0 0
        %955 = vmatpush.bf16.msra.mxu0 0
        %956 = vmatpush.bf16.msra.mxu0 0
        %957 = vmatpush.bf16.msra.mxu0 0
        %958 = vmatpush.bf16.msra.mxu0 %v946
        %959 = vmatmul.bf16.gmra.mxu0 %v949
        %v960 = vpop.f32.mrf.mxu0
        %v961 = vadd.f32 0.0, %v960
        %v962 = vpop.f32.mrf.mxu0
        %v963 = vadd.f32 0.0, %v962
        %964 = vdwg.mxu0
        %v965 = vpack.c.bf16 %v963, %v961
        %v968 = vunpack.c.l.b16 %v330
        %v969 = vunpack.c.l.b16 %v331
        %v970 = vpack.c.b16 %v969, %v968
        %v973 = vsel %vm344, %v965, 0
        %975 = vmatpush.bf16.msra.mxu0 0
        %976 = vmatpush.bf16.msra.mxu0 0
        %977 = vmatpush.bf16.msra.mxu0 0
        %978 = vmatpush.bf16.msra.mxu0 0
        %979 = vmatpush.bf16.msra.mxu0 0
        %980 = vmatpush.bf16.msra.mxu0 0
        %981 = vmatpush.bf16.msra.mxu0 0
        %982 = vmatpush.bf16.msra.mxu0 %v970
        %983 = vmatmul.bf16.gmra.mxu0 %v973
        %v984 = vpop.f32.mrf.mxu0
        %v985 = vadd.f32 0.0, %v984
        %v986 = vpop.f32.mrf.mxu0
        %v987 = vadd.f32 0.0, %v986
        %988 = vdwg.mxu0
        %v989 = vadd.f32 %v896, %v985
        %v990 = vadd.f32 %v897, %v987
        %991 = vrot.lane.b32.xlu0 %v338, 16
        %v992 = vpop.permute.xlu0 %991
        %993 = vrot.lane.b32.xlu0 %v343, 16
        %v994 = vpop.permute.xlu0 %993
        %v996 = vsel %vm344, %v992, 0
        %v999 = vsel %vm344, %v994, 0
        %1001 = vmatpush.bf16.xpose.msra.mxu0 0
        %1002 = vmatpush.bf16.xpose.msra.mxu0 0
        %1003 = vmatpush.bf16.xpose.msra.mxu0 0
        %1004 = vmatpush.bf16.xpose.msra.mxu0 0
        %1005 = vmatpush.bf16.xpose.msra.mxu0 0
        %1006 = vmatpush.bf16.xpose.msra.mxu0 0
        %1007 = vmatpush.bf16.xpose.msra.mxu0 0
        %1008 = vmatpush.bf16.xpose.msra.mxu0 %v999
        %1009 = vmatmul.bf16.gmra.mxu0 %v996
        %v1010 = vpop.f32.mrf.mxu0
        %v1011 = vadd.f32 0.0, %v1010
        %v1012 = vpop.f32.mrf.mxu0
        %v1013 = vadd.f32 0.0, %v1012
        %1014 = vdwg.mxu0
        %v1015 = vsel %vm344, %v1011, -inf
        %1016 = vmax.xlane.f32.xlu0 %v1015
        %v1017 = vpop.xlane.xlu0 %1016
        %v1018 = vsel %vm344, %v1013, -inf
        %1019 = vmax.xlane.f32.xlu0 %v1018
        %v1020 = vpop.xlane.xlu0 %1019
        %v1021 = vsub.f32 %v1011, %v1017
        %v1022 = vsub.f32 %v1013, %v1020
        %v1023 = vmul.f32 %v1021, 1.442695
        %v1024 = vpow.pop %v1023
        %v1025 = vmul.f32 %v1022, 1.442695
        %v1026 = vpow.pop %v1025
        %v1027 = vsel %vm344, %v1024, 0.0
        %1028 = vadd.xlane.f32.xlu0 %v1027
        %v1029 = vpop.xlane.xlu0 %1028
        %v1030 = vsel %vm344, %v1026, 0.0
        %1031 = vadd.xlane.f32.xlu0 %v1030
        %v1032 = vpop.xlane.xlu0 %1031
        %v1033 = vrcp.pop %v1029
        %v1034 = vrcp.pop %v1032
        %v1035 = vmul.f32 %v1024, %v1033
        %v1036 = vmul.f32 %v1026, %v1034
        %v1037 = vpack.c.bf16 %v1036, %v1035
        %1038 = vrot.lane.b32.xlu0 %v392, 16
        %v1039 = vpop.permute.xlu0 %1038
        %v1042 = vsel %vm344, %v1037, 0
        %1044 = vmatpush.bf16.msra.mxu0 0
        %1045 = vmatpush.bf16.msra.mxu0 0
        %1046 = vmatpush.bf16.msra.mxu0 0
        %1047 = vmatpush.bf16.msra.mxu0 0
        %1048 = vmatpush.bf16.msra.mxu0 0
        %1049 = vmatpush.bf16.msra.mxu0 0
        %1050 = vmatpush.bf16.msra.mxu0 0
        %1051 = vmatpush.bf16.msra.mxu0 %v1039
        %1052 = vmatmul.bf16.gmra.mxu0 %v1042
        %v1053 = vpop.f32.mrf.mxu0
        %v1054 = vadd.f32 0.0, %v1053
        %v1055 = vpop.f32.mrf.mxu0
        %v1056 = vadd.f32 0.0, %v1055
        %1057 = vdwg.mxu0
        %v1058 = vpack.c.bf16 %v1056, %v1054
        %v1061 = vunpack.c.l.b16 %v332
        %v1062 = vunpack.c.l.b16 %v333
        %v1063 = vpack.c.b16 %v1062, %v1061
        %v1066 = vsel %vm344, %v1058, 0
        %1068 = vmatpush.bf16.msra.mxu0 0
        %1069 = vmatpush.bf16.msra.mxu0 0
        %1070 = vmatpush.bf16.msra.mxu0 0
        %1071 = vmatpush.bf16.msra.mxu0 0
        %1072 = vmatpush.bf16.msra.mxu0 0
        %1073 = vmatpush.bf16.msra.mxu0 0
        %1074 = vmatpush.bf16.msra.mxu0 0
        %1075 = vmatpush.bf16.msra.mxu0 %v1063
        %1076 = vmatmul.bf16.gmra.mxu0 %v1066
        %v1077 = vpop.f32.mrf.mxu0
        %v1078 = vadd.f32 0.0, %v1077
        %v1079 = vpop.f32.mrf.mxu0
        %v1080 = vadd.f32 0.0, %v1079
        %1081 = vdwg.mxu0
        %v1082 = vadd.f32 %v989, %v1078
        %v1083 = vadd.f32 %v990, %v1080
        %v1084 = vld [vmem:[%s4] sm:$0x1]
        %v1086 = vperm.slane %v1084, 0
        %v1088 = vadd.f32 %v1082, %v1086
        %v1089 = vadd.f32 %v1083, %v1086
        %1090 = vst [vmem:[%s289] sm:$0xff] %v1088
        %1091 = vst [vmem:[%s289 + $0x8] sm:$0xff] %v1089
        %s1092 = sand.u32 %s164, 1
        %s1093 = scalar_lea.sflag [#allocation4], %s1092
        %s1094 = sand.u32 %s164, 1
        %s1095 = smul.addr %s1094, 16
        %s1096 = scalar_lea.vmem [#allocation5], %s1095
        // Predicated region
        $region45: #{cross_attention_forward.3} parent=39 // pred_check
          %p1097 = pneg %p174
        $region46: #{cross_attention_forward.3} parent=39 // pred_check_branch
          %1099 = sbr.rel (%p1097) target = $region48
        $region47: #{cross_attention_forward.3} parent=39 // pred_region
          %s1100 = smul.u32 2, %s25
          %1102 = vsyncadd %s1093, 0
          %s1103 = smul.addr %s24, 2
          %s1104 = sadd.s32 %s1100, %s1103
          %s1105 = smul.addr %s1104, 8
          %s1106 = scalar_lea.hbm %s5, %s1105
          %s1107 = sshll.u32 %s1096, 4
          %s1108 = int_to_ptr.vmem [resolvable:$true] %s1107
          %s1109 = sshll.u32 %s1106, 4
          %s1110 = int_to_ptr.hbm [resolvable:$true] %s1109
          %1115 = dma.vmem_to_hbm [thread:$0]  %s1108, 256, %s1110, %s1093, 128, 128, 8
        $region48: #{cross_attention_forward.3} parent=39 // pred_fallthru
          _
      $region40: #{cross_attention_forward.3} parent=5 // pred_fallthru
        _
      %p1116 = scmp.le.s32.totalorder 2, %s15
      // Predicated region
      $region49: #{cross_attention_forward.3} parent=5 // pred_check
        %p1117 = pneg %p1116
      $region50: #{cross_attention_forward.3} parent=5 // pred_check_branch
        %1119 = sbr.rel (%p1117) target = $region52
      $region51: #{cross_attention_forward.3} parent=5 // pred_region
        %s1120 = ssub.s32 %s15, 2
        // Predicated region
        $region53: #{cross_attention_forward.3} parent=51 // pred_check
          %p1121 = pneg %p180
        $region54: #{cross_attention_forward.3} parent=51 // pred_check_branch
          %1123 = sbr.rel (%p1121) target = $region56
        $region55: #{cross_attention_forward.3} parent=51 // pred_region
          %s1124 = sand.u32 %s165, 1
          %s1125 = scalar_lea.sflag [#allocation4], %s1124
          %s1126 = sand.u32 %s165, 1
          %s1127 = smul.addr %s1126, 16
          %s1128 = scalar_lea.vmem [#allocation5], %s1127
          %1130 = dma.done %s1125, 256
        $region56: #{cross_attention_forward.3} parent=51 // pred_fallthru
          _
      $region52: #{cross_attention_forward.3} parent=5 // pred_fallthru
        _
    $region6: #{cross_attention_forward.3} parent=1 // loop_footer
      %s19 = sadd.s32 1, %s15
    $region7: #{cross_attention_forward.3} parent=1 // loop_footer_branch
      %14 = sbr.rel target = $region3
    $region8: #{cross_attention_forward.3} parent=1 // loop_exit
      _
    %1131 = vsyncpa [#allocation3], 1
    %s1132 = scalar_lea.sflag [#allocation3], 1
    %1133 = vsyncpa %s1132, 1
    %1134 = vsyncpa [#allocation4], 1
    %s1135 = scalar_lea.sflag [#allocation4], 1
    %1136 = vsyncpa %s1135, 1

</llo_original>
